<compile_context>
chip_gen: v5e
topology: v5e:2x2
jax: 0.10.0
libtpu: 0.0.40
codegen_flags: <defaults>
</compile_context>

<pallas_src>
import math

import jax
import jax.numpy as jnp
from jax.experimental import pallas as pl
from jax.experimental.pallas import tpu as pltpu

# ---- model hyper-parameters (small, synthetic) ------------------------------
B, S, D, H, F = 2, 8, 32, 4, 64      # batch, seq, hidden, heads, ffn
VOCAB = 50
N_LAYERS = 2
N_SUB = 3                            # sub-word indices gathered per batch row
HD = D // H
R = B * S                            # flattened (batch * seq) row count


# ---- in-kernel helpers ------------------------------------------------------
def _layer_norm(x, g, b, eps=1e-5):
    mu = jnp.mean(x, axis=-1, keepdims=True)
    var = jnp.mean((x - mu) ** 2, axis=-1, keepdims=True)
    return (x - mu) * jax.lax.rsqrt(var + eps) * g + b


# ---- fused Pallas kernel: embedding + all layers + pooler + gather ----------
def fused_encoder_kernel(ids_ref, tgt_ref,                 # (R,1), (B*N_SUB,1) int32
                         tok_emb_ref, pos_emb_ref,         # (VOCAB,D) bf16, (S,D) f32
                         wqkv_ref, bqkv_ref,               # (L,D,3D) bf16, (L,1,3D) f32
                         wo_ref, bo_ref,                   # (L,D,D)  bf16, (L,1,D)  f32
                         w1_ref, b1_ref,                   # (L,D,F)  bf16, (L,1,F)  f32
                         w2_ref, b2_ref,                   # (L,F,D)  bf16, (L,1,D)  f32
                         ln_ref,                           # (L,4,D) f32
                         wp_ref, bp_ref,                   # (D,D) bf16, (1,D) f32
                         ret_ref, pool_ref):               # (B*N_SUB,D), (B,D) f32
    f32, bf16 = jnp.float32, jnp.bfloat16

    # ---- fused embedding lookup: one-hot @ table + positional ---------------
    vocab_iota = jax.lax.broadcasted_iota(jnp.int32, (R, VOCAB), 1)
    emb_onehot = jnp.where(ids_ref[...] == vocab_iota, 1.0, 0.0).astype(bf16)
    h = jnp.dot(emb_onehot, tok_emb_ref[...], preferred_element_type=f32)
    h = (h.reshape(B, S, D) + pos_emb_ref[...][None]).reshape(R, D)   # f32

    # TODO(synk): at realistic D/F/L switch to a grid=(N_LAYERS,) streamed
    # layout (per-layer weight blocks, h carried in persistent VMEM) so the
    # resident weight footprint stays flat against v7x's 64 MiB VMEM.
    for l in range(N_LAYERS):                              # static loop over layers
        # ---- fused QKV projection (one MXU pass; scale folded into Wq/bq) ----
        qkv = (jnp.dot(h.astype(bf16), wqkv_ref[l], preferred_element_type=f32)
               + bqkv_ref[l])                               # (R, 3D) f32

        def split_heads(off):
            # (R, 3D) -> (H*B, S, HD); batch axis ordered (head, batch)
            cols = [qkv[:, off + hh * HD: off + (hh + 1) * HD].reshape(B, S, HD)
                    for hh in range(H)]
            return jnp.stack(cols, axis=0).reshape(H * B, S, HD)

        qh, kh, vh = split_heads(0), split_heads(D), split_heads(2 * D)

        # ---- all heads batched: one contraction for scores, one for context --
        s = jnp.einsum('bqd,bkd->bqk', qh.astype(bf16), kh.astype(bf16),
                       preferred_element_type=f32)          # (H*B, S, S) f32
        s = s - jnp.max(s, axis=-1, keepdims=True)
        p = jnp.exp(s)
        p = p * pl.reciprocal(jnp.sum(p, axis=-1, keepdims=True), approx=True)
        ctx = jnp.einsum('bqk,bkd->bqd', p.astype(bf16), vh.astype(bf16),
                         preferred_element_type=f32)        # (H*B, S, HD) f32

        # ---- output projection folded over heads (no lane concat) ------------
        # attn_out = sum_h ctx_h @ Wo_h ; one batched contraction + leading sum
        wo_h = wo_ref[l].reshape(H, HD, D)                  # bf16
        wo_g = jnp.broadcast_to(wo_h[:, None], (H, B, HD, D)).reshape(H * B, HD, D)
        per_g = jnp.einsum('gsd,gdo->gso', ctx.astype(bf16), wo_g,
                           preferred_element_type=f32)      # (H*B, S, D)
        attn_out = jnp.sum(per_g.reshape(H, B, S, D), axis=0)        # (B, S, D)
        attn_out = attn_out.reshape(R, D) + bo_ref[l]

        # ---- residual + LN1, FFN + residual + LN2 (f32 VPU math) -------------
        ln = ln_ref[l]                                      # (4, D) LayerNorm slab
        h1 = _layer_norm(h + attn_out, ln[0:1, :], ln[1:2, :])

        ff = jnp.maximum(
            jnp.dot(h1.astype(bf16), w1_ref[l], preferred_element_type=f32)
            + b1_ref[l], 0.0)
        ff = (jnp.dot(ff.astype(bf16), w2_ref[l], preferred_element_type=f32)
              + b2_ref[l])
        h = _layer_norm(h1 + ff, ln[2:3, :], ln[3:4, :])

    # ---- BERT-style pooler: tanh([CLS] @ Wp + bp), CLS from in-register h ----
    cls = h.reshape(B, S, D)[:, 0:1, :].reshape(B, D)
    pool_ref[...] = jnp.tanh(
        jnp.dot(cls.astype(bf16), wp_ref[...], preferred_element_type=f32)
        + bp_ref[...])

    # ---- [CLS]/[SEP]-filtered sub-word gather as one one-hot MXU op ----------
    # tgt rows already encode b*S + idx + 1 (filtered row i == full row i + 1),
    # in batch-major (vstack) order.  f32 one-hot keeps the gathered rows exact.
    row_iota = jax.lax.broadcasted_iota(jnp.int32, (B * N_SUB, R), 1)
    gather = jnp.where(tgt_ref[...] == row_iota, 1.0, 0.0).astype(f32)
    ret_ref[...] = jnp.dot(gather, h, preferred_element_type=f32)


def fused_forward(params, ids_col, tgt_col):
    L = N_LAYERS
    grid_spec = pltpu.PrefetchScalarGridSpec(
        num_scalar_prefetch=0,
        grid=(1,),
        in_specs=[
            pl.BlockSpec((R, 1), lambda *_: (0, 0)),                  # token ids
            pl.BlockSpec((B * N_SUB, 1), lambda *_: (0, 0)),          # gather targets
            pl.BlockSpec((VOCAB, D), lambda *_: (0, 0)),              # tok_emb (bf16)
            pl.BlockSpec((S, D), lambda *_: (0, 0)),                  # pos_emb
            pl.BlockSpec((L, D, 3 * D), lambda *_: (0, 0, 0)),        # w_qkv slab
            pl.BlockSpec((L, 1, 3 * D), lambda *_: (0, 0, 0)),        # b_qkv slab
            pl.BlockSpec((L, D, D), lambda *_: (0, 0, 0)),            # wo slab
            pl.BlockSpec((L, 1, D), lambda *_: (0, 0, 0)),            # bo slab
            pl.BlockSpec((L, D, F), lambda *_: (0, 0, 0)),            # w1 slab
            pl.BlockSpec((L, 1, F), lambda *_: (0, 0, 0)),            # b1 slab
            pl.BlockSpec((L, F, D), lambda *_: (0, 0, 0)),            # w2 slab
            pl.BlockSpec((L, 1, D), lambda *_: (0, 0, 0)),            # b2 slab
            pl.BlockSpec((L, 4, D), lambda *_: (0, 0, 0)),            # LayerNorm slab
            pl.BlockSpec((D, D), lambda *_: (0, 0)),                  # wp
            pl.BlockSpec((1, D), lambda *_: (0, 0)),                  # bp
        ],
        out_specs=[
            pl.BlockSpec((B * N_SUB, D), lambda *_: (0, 0)),          # ret_state
            pl.BlockSpec((B, D), lambda *_: (0, 0)),                  # pooler_output
        ],
    )
    # TODO(synk): on v7x, shard the batch across the two TensorCores with
    # grid=(B,), dimension_semantics=("parallel",) and batch-indexed io specs.
    return pl.pallas_call(
        fused_encoder_kernel,
        out_shape=(jax.ShapeDtypeStruct((B * N_SUB, D), jnp.float32),
                   jax.ShapeDtypeStruct((B, D), jnp.float32)),
        grid_spec=grid_spec,
        compiler_params=pltpu.CompilerParams(
            dimension_semantics=("arbitrary",)),
    )(ids_col, tgt_col,
      params["tok_emb"], params["pos_emb"],
      params["w_qkv"], params["b_qkv"], params["wo"], params["bo"],
      params["w1"], params["b1"], params["w2"], params["b2"],
      params["ln"], params["wp"], params["bp"])


# ---- deterministic parameter init (packed layout, bf16 MXU weights) ----------
def init_params(key):
    keys = iter(jax.random.split(key, 64))
    bf16 = jnp.bfloat16

    def w(shape):
        return (0.02 * jax.random.normal(next(keys), shape)).astype(jnp.float32)

    scale = 1.0 / math.sqrt(HD)      # attention scale folded into Wq AND q-bias
    w_qkv, b_qkv, wo, bo, w1, b1, w2, b2, ln = ([] for _ in range(9))
    for _ in range(N_LAYERS):
        wq = w((D, D)) * scale
        wk, wv = w((D, D)), w((D, D))
        w_qkv.append(jnp.concatenate([wq, wk, wv], axis=1))           # (D, 3D)
        bq = jnp.zeros((1, D), jnp.float32) * scale                   # scaled (zero here)
        b_qkv.append(jnp.concatenate([bq, jnp.zeros((1, 2 * D), jnp.float32)], axis=1))
        wo.append(w((D, D))); bo.append(jnp.zeros((1, D), jnp.float32))
        w1.append(w((D, F))); b1.append(jnp.zeros((1, F), jnp.float32))
        w2.append(w((F, D))); b2.append(jnp.zeros((1, D), jnp.float32))
        # rows: ln1_gamma, ln1_beta, ln2_gamma, ln2_beta
        ln.append(jnp.stack([jnp.ones(D), jnp.zeros(D),
                             jnp.ones(D), jnp.zeros(D)]).astype(jnp.float32))

    return {
        "tok_emb": w((VOCAB, D)).astype(bf16),
        "pos_emb": w((S, D)),                                          # f32
        "w_qkv": jnp.stack(w_qkv).astype(bf16), "b_qkv": jnp.stack(b_qkv),
        "wo": jnp.stack(wo).astype(bf16), "bo": jnp.stack(bo),
        "w1": jnp.stack(w1).astype(bf16), "b1": jnp.stack(b1),
        "w2": jnp.stack(w2).astype(bf16), "b2": jnp.stack(b2),
        "ln": jnp.stack(ln),
        "wp": w((D, D)).astype(bf16), "bp": jnp.zeros((1, D), jnp.float32),
    }


# ---- forward pass of the wrapper module --------------------------------------
def subword_embedder_forward(params, x, sub_word_idx):
    # "model(x) -> (last_hidden_state, pooler_output)" plus the [CLS]/[SEP]
    # filter and per-batch sub-word gather, all inside one fused Pallas kernel.
    ids_col = x.reshape(R, 1).astype(jnp.int32)
    row_base = (jnp.arange(B, dtype=jnp.int32) * S)[:, None]           # (B, 1)
    # filtered[i] == full_sequence[i + 1]; rows ordered batch-major (vstack).
    tgt_col = (sub_word_idx.astype(jnp.int32) + 1 + row_base).reshape(B * N_SUB, 1)
    ret_state, pooler_output = fused_forward(params, ids_col, tgt_col)
    return ret_state, pooler_output


if __name__ == "__main__":
    key = jax.random.PRNGKey(0)
    pkey, xkey, ikey = jax.random.split(key, 3)
    params = init_params(pkey)

    x = jax.random.randint(xkey, (B, S), 0, VOCAB, dtype=jnp.int32)
    # indices into the filtered (S-2)-token sequence (after stripping CLS/SEP)
    sub_word_idx = jax.random.randint(ikey, (B, N_SUB), 0, S - 2, dtype=jnp.int32)

    ret_state, pooler_output = subword_embedder_forward(params, x, sub_word_idx)
    jax.block_until_ready(ret_state)
    jax.block_until_ready(pooler_output)

    assert ret_state.shape == (B * N_SUB, D)
    assert pooler_output.shape == (B, D)
    assert bool(jnp.all(jnp.isfinite(ret_state)))
    assert bool(jnp.all(jnp.isfinite(pooler_output)))
    print("KERNEL_OK")
</pallas_src>

<mosaic_0001>
module attributes {stable_mosaic.version = 11 : i64} {
  func.func @fused_encoder_kernel(%arg0: i32, %arg1: memref<16x1xi32, #tpu.memory_space<vmem>>, %arg2: memref<6x1xi32, #tpu.memory_space<vmem>>, %arg3: memref<50x32xbf16, #tpu.memory_space<vmem>>, %arg4: memref<8x32xf32, #tpu.memory_space<vmem>>, %arg5: memref<2x32x96xbf16, #tpu.memory_space<vmem>>, %arg6: memref<2x1x96xf32, #tpu.memory_space<vmem>>, %arg7: memref<2x32x32xbf16, #tpu.memory_space<vmem>>, %arg8: memref<2x1x32xf32, #tpu.memory_space<vmem>>, %arg9: memref<2x32x64xbf16, #tpu.memory_space<vmem>>, %arg10: memref<2x1x64xf32, #tpu.memory_space<vmem>>, %arg11: memref<2x64x32xbf16, #tpu.memory_space<vmem>>, %arg12: memref<2x1x32xf32, #tpu.memory_space<vmem>>, %arg13: memref<2x4x32xf32, #tpu.memory_space<vmem>>, %arg14: memref<32x32xbf16, #tpu.memory_space<vmem>>, %arg15: memref<1x32xf32, #tpu.memory_space<vmem>>, %arg16: memref<6x32xf32, #tpu.memory_space<vmem>>, %arg17: memref<2x32xf32, #tpu.memory_space<vmem>>) attributes {dimension_semantics = [#tpu.dimension_semantics<arbitrary>], iteration_bounds = array<i64: 1>, scalar_prefetch = 0 : i64, scratch_operands = 0 : i64, tpu.core_type = #tpu.core_type<tc>, window_params = [{pipeline_mode = #tpu.pipeline_mode<synchronous>, transform_indices = @transform_0, window_bounds = array<i64: 16, 1>}, {pipeline_mode = #tpu.pipeline_mode<synchronous>, transform_indices = @transform_1, window_bounds = array<i64: 6, 1>}, {pipeline_mode = #tpu.pipeline_mode<synchronous>, transform_indices = @transform_2, window_bounds = array<i64: 50, 32>}, {pipeline_mode = #tpu.pipeline_mode<synchronous>, transform_indices = @transform_3, window_bounds = array<i64: 8, 32>}, {pipeline_mode = #tpu.pipeline_mode<synchronous>, transform_indices = @transform_4, window_bounds = array<i64: 2, 32, 96>}, {pipeline_mode = #tpu.pipeline_mode<synchronous>, transform_indices = @transform_5, window_bounds = array<i64: 2, 1, 96>}, {pipeline_mode = #tpu.pipeline_mode<synchronous>, transform_indices = @transform_6, window_bounds = array<i64: 2, 32, 32>}, {pipeline_mode = #tpu.pipeline_mode<synchronous>, transform_indices = @transform_7, window_bounds = array<i64: 2, 1, 32>}, {pipeline_mode = #tpu.pipeline_mode<synchronous>, transform_indices = @transform_8, window_bounds = array<i64: 2, 32, 64>}, {pipeline_mode = #tpu.pipeline_mode<synchronous>, transform_indices = @transform_9, window_bounds = array<i64: 2, 1, 64>}, {pipeline_mode = #tpu.pipeline_mode<synchronous>, transform_indices = @transform_10, window_bounds = array<i64: 2, 64, 32>}, {pipeline_mode = #tpu.pipeline_mode<synchronous>, transform_indices = @transform_11, window_bounds = array<i64: 2, 1, 32>}, {pipeline_mode = #tpu.pipeline_mode<synchronous>, transform_indices = @transform_12, window_bounds = array<i64: 2, 4, 32>}, {pipeline_mode = #tpu.pipeline_mode<synchronous>, transform_indices = @transform_13, window_bounds = array<i64: 32, 32>}, {pipeline_mode = #tpu.pipeline_mode<synchronous>, transform_indices = @transform_14, window_bounds = array<i64: 1, 32>}, {pipeline_mode = #tpu.pipeline_mode<synchronous>, transform_indices = @transform_15, window_bounds = array<i64: 6, 32>}, {pipeline_mode = #tpu.pipeline_mode<synchronous>, transform_indices = @transform_16, window_bounds = array<i64: 2, 32>}]} {
    %0 = tpu.iota {dimensions = array<i32: 1>} : vector<16x50xi32>
    %c0 = arith.constant 0 : index
    %c0_0 = arith.constant 0 : index
    %1 = vector.load %arg1[%c0, %c0_0] : memref<16x1xi32, #tpu.memory_space<vmem>>, vector<16x1xi32>
    %2 = vector.broadcast %1 : vector<16x1xi32> to vector<16x50xi32>
    %3 = arith.cmpi eq, %2, %0 : vector<16x50xi32>
    %cst = arith.constant 1.000000e+00 : f32
    %cst_1 = arith.constant 0.000000e+00 : f32
    %4 = vector.broadcast %cst : f32 to vector<16x50xf32>
    %5 = vector.broadcast %cst_1 : f32 to vector<16x50xf32>
    %6 = arith.select %3, %4, %5 : vector<16x50xi1>, vector<16x50xf32>
    %7 = arith.truncf %6 : vector<16x50xf32> to vector<16x50xbf16>
    %c0_2 = arith.constant 0 : index
    %c0_3 = arith.constant 0 : index
    %8 = vector.load %arg3[%c0_2, %c0_3] : memref<50x32xbf16, #tpu.memory_space<vmem>>, vector<50x32xbf16>
    %cst_4 = arith.constant dense<0.000000e+00> : vector<16x32xf32>
    %9 = tpu.matmul %7, %8, %cst_4 {dimension_numbers = #tpu.dot_dimension_numbers<[1], [0], [0], [1], [0, 0, 1, 1], [], []>} : vector<16x50xbf16>, vector<50x32xbf16>, vector<16x32xf32> -> vector<16x32xf32>
    %10 = vector.shape_cast %9 : vector<16x32xf32> to vector<2x8x32xf32>
    %c0_5 = arith.constant 0 : index
    %c0_6 = arith.constant 0 : index
    %11 = vector.load %arg4[%c0_5, %c0_6] : memref<8x32xf32, #tpu.memory_space<vmem>>, vector<8x32xf32>
    %12 = vector.shape_cast %11 : vector<8x32xf32> to vector<1x8x32xf32>
    %13 = vector.broadcast %12 : vector<1x8x32xf32> to vector<2x8x32xf32>
    %14 = arith.addf %10, %13 : vector<2x8x32xf32>
    %15 = vector.shape_cast %14 : vector<2x8x32xf32> to vector<16x32xf32>
    %16 = arith.truncf %15 : vector<16x32xf32> to vector<16x32xbf16>
    %c0_7 = arith.constant 0 : index
    %c0_8 = arith.constant 0 : index
    %c0_9 = arith.constant 0 : index
    %17 = vector.load %arg5[%c0_7, %c0_8, %c0_9] : memref<2x32x96xbf16, #tpu.memory_space<vmem>>, vector<1x32x96xbf16>
    %18 = vector.shape_cast %17 : vector<1x32x96xbf16> to vector<32x96xbf16>
    %cst_10 = arith.constant dense<0.000000e+00> : vector<16x96xf32>
    %19 = tpu.matmul %16, %18, %cst_10 {dimension_numbers = #tpu.dot_dimension_numbers<[1], [0], [0], [1], [0, 0, 1, 1], [], []>} : vector<16x32xbf16>, vector<32x96xbf16>, vector<16x96xf32> -> vector<16x96xf32>
    %c0_11 = arith.constant 0 : index
    %c0_12 = arith.constant 0 : index
    %c0_13 = arith.constant 0 : index
    %20 = vector.load %arg6[%c0_11, %c0_12, %c0_13] : memref<2x1x96xf32, #tpu.memory_space<vmem>>, vector<1x1x96xf32>
    %21 = vector.shape_cast %20 : vector<1x1x96xf32> to vector<1x96xf32>
    %22 = vector.broadcast %21 : vector<1x96xf32> to vector<16x96xf32>
    %23 = arith.addf %19, %22 : vector<16x96xf32>
    %24 = vector.extract_strided_slice %23 {offsets = [0, 0], sizes = [16, 8], strides = [1, 1]} : vector<16x96xf32> to vector<16x8xf32>
    %25 = vector.shape_cast %24 : vector<16x8xf32> to vector<2x8x8xf32>
    %26 = vector.extract_strided_slice %23 {offsets = [0, 8], sizes = [16, 8], strides = [1, 1]} : vector<16x96xf32> to vector<16x8xf32>
    %27 = vector.shape_cast %26 : vector<16x8xf32> to vector<2x8x8xf32>
    %28 = vector.extract_strided_slice %23 {offsets = [0, 16], sizes = [16, 8], strides = [1, 1]} : vector<16x96xf32> to vector<16x8xf32>
    %29 = vector.shape_cast %28 : vector<16x8xf32> to vector<2x8x8xf32>
    %30 = vector.extract_strided_slice %23 {offsets = [0, 24], sizes = [16, 8], strides = [1, 1]} : vector<16x96xf32> to vector<16x8xf32>
    %31 = vector.shape_cast %30 : vector<16x8xf32> to vector<2x8x8xf32>
    %32 = vector.shape_cast %25 : vector<2x8x8xf32> to vector<1x2x8x8xf32>
    %33 = vector.shape_cast %27 : vector<2x8x8xf32> to vector<1x2x8x8xf32>
    %34 = vector.shape_cast %29 : vector<2x8x8xf32> to vector<1x2x8x8xf32>
    %35 = vector.shape_cast %31 : vector<2x8x8xf32> to vector<1x2x8x8xf32>
    %36 = tpu.concatenate %32, %33, %34, %35 in 0 : vector<1x2x8x8xf32>, vector<1x2x8x8xf32>, vector<1x2x8x8xf32>, vector<1x2x8x8xf32> -> vector<4x2x8x8xf32>
    %37 = vector.shape_cast %36 : vector<4x2x8x8xf32> to vector<8x8x8xf32>
    %38 = vector.extract_strided_slice %23 {offsets = [0, 32], sizes = [16, 8], strides = [1, 1]} : vector<16x96xf32> to vector<16x8xf32>
    %39 = vector.shape_cast %38 : vector<16x8xf32> to vector<2x8x8xf32>
    %40 = vector.extract_strided_slice %23 {offsets = [0, 40], sizes = [16, 8], strides = [1, 1]} : vector<16x96xf32> to vector<16x8xf32>
    %41 = vector.shape_cast %40 : vector<16x8xf32> to vector<2x8x8xf32>
    %42 = vector.extract_strided_slice %23 {offsets = [0, 48], sizes = [16, 8], strides = [1, 1]} : vector<16x96xf32> to vector<16x8xf32>
    %43 = vector.shape_cast %42 : vector<16x8xf32> to vector<2x8x8xf32>
    %44 = vector.extract_strided_slice %23 {offsets = [0, 56], sizes = [16, 8], strides = [1, 1]} : vector<16x96xf32> to vector<16x8xf32>
    %45 = vector.shape_cast %44 : vector<16x8xf32> to vector<2x8x8xf32>
    %46 = vector.shape_cast %39 : vector<2x8x8xf32> to vector<1x2x8x8xf32>
    %47 = vector.shape_cast %41 : vector<2x8x8xf32> to vector<1x2x8x8xf32>
    %48 = vector.shape_cast %43 : vector<2x8x8xf32> to vector<1x2x8x8xf32>
    %49 = vector.shape_cast %45 : vector<2x8x8xf32> to vector<1x2x8x8xf32>
    %50 = tpu.concatenate %46, %47, %48, %49 in 0 : vector<1x2x8x8xf32>, vector<1x2x8x8xf32>, vector<1x2x8x8xf32>, vector<1x2x8x8xf32> -> vector<4x2x8x8xf32>
    %51 = vector.shape_cast %50 : vector<4x2x8x8xf32> to vector<8x8x8xf32>
    %52 = vector.extract_strided_slice %23 {offsets = [0, 64], sizes = [16, 8], strides = [1, 1]} : vector<16x96xf32> to vector<16x8xf32>
    %53 = vector.shape_cast %52 : vector<16x8xf32> to vector<2x8x8xf32>
    %54 = vector.extract_strided_slice %23 {offsets = [0, 72], sizes = [16, 8], strides = [1, 1]} : vector<16x96xf32> to vector<16x8xf32>
    %55 = vector.shape_cast %54 : vector<16x8xf32> to vector<2x8x8xf32>
    %56 = vector.extract_strided_slice %23 {offsets = [0, 80], sizes = [16, 8], strides = [1, 1]} : vector<16x96xf32> to vector<16x8xf32>
    %57 = vector.shape_cast %56 : vector<16x8xf32> to vector<2x8x8xf32>
    %58 = vector.extract_strided_slice %23 {offsets = [0, 88], sizes = [16, 8], strides = [1, 1]} : vector<16x96xf32> to vector<16x8xf32>
    %59 = vector.shape_cast %58 : vector<16x8xf32> to vector<2x8x8xf32>
    %60 = vector.shape_cast %53 : vector<2x8x8xf32> to vector<1x2x8x8xf32>
    %61 = vector.shape_cast %55 : vector<2x8x8xf32> to vector<1x2x8x8xf32>
    %62 = vector.shape_cast %57 : vector<2x8x8xf32> to vector<1x2x8x8xf32>
    %63 = vector.shape_cast %59 : vector<2x8x8xf32> to vector<1x2x8x8xf32>
    %64 = tpu.concatenate %60, %61, %62, %63 in 0 : vector<1x2x8x8xf32>, vector<1x2x8x8xf32>, vector<1x2x8x8xf32>, vector<1x2x8x8xf32> -> vector<4x2x8x8xf32>
    %65 = vector.shape_cast %64 : vector<4x2x8x8xf32> to vector<8x8x8xf32>
    %66 = arith.truncf %37 : vector<8x8x8xf32> to vector<8x8x8xbf16>
    %67 = arith.truncf %51 : vector<8x8x8xf32> to vector<8x8x8xbf16>
    "tpu.trace_start"() <{level = 10 : i32, message = "bqd,bkd->bqk"}> : () -> ()
    %cst_14 = arith.constant dense<0.000000e+00> : vector<8x8x8xf32>
    %68 = tpu.matmul %66, %67, %cst_14 {dimension_numbers = #tpu.dot_dimension_numbers<[2], [2], [1], [1], [0, 0, 0, 1, 1, 1], [0], [0]>} : vector<8x8x8xbf16>, vector<8x8x8xbf16>, vector<8x8x8xf32> -> vector<8x8x8xf32>
    "tpu.trace_stop"() : () -> ()
    %cst_15 = arith.constant dense<0xFF800000> : vector<8x8xf32>
    %69 = vector.multi_reduction <maximumf>, %68, %cst_15 [2] : vector<8x8x8xf32> to vector<8x8xf32>
    %70 = vector.shape_cast %69 : vector<8x8xf32> to vector<8x8x1xf32>
    %71 = vector.broadcast %70 : vector<8x8x1xf32> to vector<8x8x8xf32>
    %72 = arith.subf %68, %71 : vector<8x8x8xf32>
    %73 = math.exp %72 : vector<8x8x8xf32>
    %cst_16 = arith.constant dense<0.000000e+00> : vector<8x8xf32>
    %74 = vector.multi_reduction <add>, %73, %cst_16 [2] : vector<8x8x8xf32> to vector<8x8xf32>
    %75 = vector.shape_cast %74 : vector<8x8xf32> to vector<8x8x1xf32>
    %76 = tpu.reciprocal %75 {approx = true} : vector<8x8x1xf32> -> vector<8x8x1xf32>
    %77 = vector.broadcast %76 : vector<8x8x1xf32> to vector<8x8x8xf32>
    %78 = arith.mulf %73, %77 : vector<8x8x8xf32>
    %79 = arith.truncf %78 : vector<8x8x8xf32> to vector<8x8x8xbf16>
    %80 = arith.truncf %65 : vector<8x8x8xf32> to vector<8x8x8xbf16>
    "tpu.trace_start"() <{level = 10 : i32, message = "bqk,bkd->bqd"}> : () -> ()
    %cst_17 = arith.constant dense<0.000000e+00> : vector<8x8x8xf32>
    %81 = tpu.matmul %79, %80, %cst_17 {dimension_numbers = #tpu.dot_dimension_numbers<[2], [1], [1], [2], [0, 0, 0, 1, 1, 2], [0], [0]>} : vector<8x8x8xbf16>, vector<8x8x8xbf16>, vector<8x8x8xf32> -> vector<8x8x8xf32>
    "tpu.trace_stop"() : () -> ()
    %c0_18 = arith.constant 0 : index
    %c0_19 = arith.constant 0 : index
    %c0_20 = arith.constant 0 : index
    %82 = vector.load %arg7[%c0_18, %c0_19, %c0_20] : memref<2x32x32xbf16, #tpu.memory_space<vmem>>, vector<1x32x32xbf16>
    %83 = vector.shape_cast %82 : vector<1x32x32xbf16> to vector<32x32xbf16>
    %84 = vector.shape_cast %83 : vector<32x32xbf16> to vector<4x8x32xbf16>
    %85 = vector.shape_cast %84 : vector<4x8x32xbf16> to vector<4x1x8x32xbf16>
    %86 = vector.shape_cast %85 : vector<4x1x8x32xbf16> to vector<4x1x8x32xbf16>
    %87 = vector.broadcast %86 : vector<4x1x8x32xbf16> to vector<4x2x8x32xbf16>
    %88 = vector.shape_cast %87 : vector<4x2x8x32xbf16> to vector<8x8x32xbf16>
    %89 = arith.truncf %81 : vector<8x8x8xf32> to vector<8x8x8xbf16>
    "tpu.trace_start"() <{level = 10 : i32, message = "gsd,gdo->gso"}> : () -> ()
    %cst_21 = arith.constant dense<0.000000e+00> : vector<8x8x32xf32>
    %90 = tpu.matmul %89, %88, %cst_21 {dimension_numbers = #tpu.dot_dimension_numbers<[2], [1], [1], [2], [0, 0, 0, 1, 1, 2], [0], [0]>} : vector<8x8x8xbf16>, vector<8x8x32xbf16>, vector<8x8x32xf32> -> vector<8x8x32xf32>
    "tpu.trace_stop"() : () -> ()
    %91 = vector.shape_cast %90 : vector<8x8x32xf32> to vector<4x2x8x32xf32>
    %cst_22 = arith.constant dense<0.000000e+00> : vector<2x8x32xf32>
    %92 = vector.multi_reduction <add>, %91, %cst_22 [0] : vector<4x2x8x32xf32> to vector<2x8x32xf32>
    %93 = vector.shape_cast %92 : vector<2x8x32xf32> to vector<16x32xf32>
    %c0_23 = arith.constant 0 : index
    %c0_24 = arith.constant 0 : index
    %c0_25 = arith.constant 0 : index
    %94 = vector.load %arg8[%c0_23, %c0_24, %c0_25] : memref<2x1x32xf32, #tpu.memory_space<vmem>>, vector<1x1x32xf32>
    %95 = vector.shape_cast %94 : vector<1x1x32xf32> to vector<1x32xf32>
    %96 = vector.broadcast %95 : vector<1x32xf32> to vector<16x32xf32>
    %97 = arith.addf %93, %96 : vector<16x32xf32>
    %c0_26 = arith.constant 0 : index
    %c0_27 = arith.constant 0 : index
    %c0_28 = arith.constant 0 : index
    %98 = vector.load %arg13[%c0_26, %c0_27, %c0_28] : memref<2x4x32xf32, #tpu.memory_space<vmem>>, vector<1x4x32xf32>
    %99 = vector.shape_cast %98 : vector<1x4x32xf32> to vector<4x32xf32>
    %100 = arith.addf %15, %97 : vector<16x32xf32>
    %101 = vector.extract_strided_slice %99 {offsets = [0, 0], sizes = [1, 32], strides = [1, 1]} : vector<4x32xf32> to vector<1x32xf32>
    %102 = vector.extract_strided_slice %99 {offsets = [1, 0], sizes = [1, 32], strides = [1, 1]} : vector<4x32xf32> to vector<1x32xf32>
    %cst_29 = arith.constant dense<0.000000e+00> : vector<16xf32>
    %103 = vector.multi_reduction <add>, %100, %cst_29 [1] : vector<16x32xf32> to vector<16xf32>
    %104 = vector.shape_cast %103 : vector<16xf32> to vector<16x1xf32>
    %cst_30 = arith.constant 3.200000e+01 : f32
    %105 = vector.broadcast %cst_30 : f32 to vector<16x1xf32>
    %106 = arith.divf %104, %105 : vector<16x1xf32>
    %107 = vector.broadcast %106 : vector<16x1xf32> to vector<16x32xf32>
    %108 = arith.subf %100, %107 : vector<16x32xf32>
    %109 = arith.mulf %108, %108 : vector<16x32xf32>
    %cst_31 = arith.constant dense<0.000000e+00> : vector<16xf32>
    %110 = vector.multi_reduction <add>, %109, %cst_31 [1] : vector<16x32xf32> to vector<16xf32>
    %111 = vector.shape_cast %110 : vector<16xf32> to vector<16x1xf32>
    %cst_32 = arith.constant 3.200000e+01 : f32
    %112 = vector.broadcast %cst_32 : f32 to vector<16x1xf32>
    %113 = arith.divf %111, %112 : vector<16x1xf32>
    %114 = vector.broadcast %106 : vector<16x1xf32> to vector<16x32xf32>
    %115 = arith.subf %100, %114 : vector<16x32xf32>
    %cst_33 = arith.constant 9.99999974E-6 : f32
    %116 = vector.broadcast %cst_33 : f32 to vector<16x1xf32>
    %117 = arith.addf %113, %116 : vector<16x1xf32>
    %118 = math.rsqrt %117 : vector<16x1xf32>
    %119 = vector.broadcast %118 : vector<16x1xf32> to vector<16x32xf32>
    %120 = arith.mulf %115, %119 : vector<16x32xf32>
    %121 = vector.broadcast %101 : vector<1x32xf32> to vector<16x32xf32>
    %122 = arith.mulf %120, %121 : vector<16x32xf32>
    %123 = vector.broadcast %102 : vector<1x32xf32> to vector<16x32xf32>
    %124 = arith.addf %122, %123 : vector<16x32xf32>
    %125 = arith.truncf %124 : vector<16x32xf32> to vector<16x32xbf16>
    %c0_34 = arith.constant 0 : index
    %c0_35 = arith.constant 0 : index
    %c0_36 = arith.constant 0 : index
    %126 = vector.load %arg9[%c0_34, %c0_35, %c0_36] : memref<2x32x64xbf16, #tpu.memory_space<vmem>>, vector<1x32x64xbf16>
    %127 = vector.shape_cast %126 : vector<1x32x64xbf16> to vector<32x64xbf16>
    %cst_37 = arith.constant dense<0.000000e+00> : vector<16x64xf32>
    %128 = tpu.matmul %125, %127, %cst_37 {dimension_numbers = #tpu.dot_dimension_numbers<[1], [0], [0], [1], [0, 0, 1, 1], [], []>} : vector<16x32xbf16>, vector<32x64xbf16>, vector<16x64xf32> -> vector<16x64xf32>
    %c0_38 = arith.constant 0 : index
    %c0_39 = arith.constant 0 : index
    %c0_40 = arith.constant 0 : index
    %129 = vector.load %arg10[%c0_38, %c0_39, %c0_40] : memref<2x1x64xf32, #tpu.memory_space<vmem>>, vector<1x1x64xf32>
    %130 = vector.shape_cast %129 : vector<1x1x64xf32> to vector<1x64xf32>
    %131 = vector.broadcast %130 : vector<1x64xf32> to vector<16x64xf32>
    %132 = arith.addf %128, %131 : vector<16x64xf32>
    %cst_41 = arith.constant 0.000000e+00 : f32
    %133 = vector.broadcast %cst_41 : f32 to vector<16x64xf32>
    %134 = arith.maximumf %132, %133 : vector<16x64xf32>
    %135 = arith.truncf %134 : vector<16x64xf32> to vector<16x64xbf16>
    %c0_42 = arith.constant 0 : index
    %c0_43 = arith.constant 0 : index
    %c0_44 = arith.constant 0 : index
    %136 = vector.load %arg11[%c0_42, %c0_43, %c0_44] : memref<2x64x32xbf16, #tpu.memory_space<vmem>>, vector<1x64x32xbf16>
    %137 = vector.shape_cast %136 : vector<1x64x32xbf16> to vector<64x32xbf16>
    %cst_45 = arith.constant dense<0.000000e+00> : vector<16x32xf32>
    %138 = tpu.matmul %135, %137, %cst_45 {dimension_numbers = #tpu.dot_dimension_numbers<[1], [0], [0], [1], [0, 0, 1, 1], [], []>} : vector<16x64xbf16>, vector<64x32xbf16>, vector<16x32xf32> -> vector<16x32xf32>
    %c0_46 = arith.constant 0 : index
    %c0_47 = arith.constant 0 : index
    %c0_48 = arith.constant 0 : index
    %139 = vector.load %arg12[%c0_46, %c0_47, %c0_48] : memref<2x1x32xf32, #tpu.memory_space<vmem>>, vector<1x1x32xf32>
    %140 = vector.shape_cast %139 : vector<1x1x32xf32> to vector<1x32xf32>
    %141 = vector.broadcast %140 : vector<1x32xf32> to vector<16x32xf32>
    %142 = arith.addf %138, %141 : vector<16x32xf32>
    %143 = arith.addf %124, %142 : vector<16x32xf32>
    %144 = vector.extract_strided_slice %99 {offsets = [2, 0], sizes = [1, 32], strides = [1, 1]} : vector<4x32xf32> to vector<1x32xf32>
    %145 = vector.extract_strided_slice %99 {offsets = [3, 0], sizes = [1, 32], strides = [1, 1]} : vector<4x32xf32> to vector<1x32xf32>
    %cst_49 = arith.constant dense<0.000000e+00> : vector<16xf32>
    %146 = vector.multi_reduction <add>, %143, %cst_49 [1] : vector<16x32xf32> to vector<16xf32>
    %147 = vector.shape_cast %146 : vector<16xf32> to vector<16x1xf32>
    %cst_50 = arith.constant 3.200000e+01 : f32
    %148 = vector.broadcast %cst_50 : f32 to vector<16x1xf32>
    %149 = arith.divf %147, %148 : vector<16x1xf32>
    %150 = vector.broadcast %149 : vector<16x1xf32> to vector<16x32xf32>
    %151 = arith.subf %143, %150 : vector<16x32xf32>
    %152 = arith.mulf %151, %151 : vector<16x32xf32>
    %cst_51 = arith.constant dense<0.000000e+00> : vector<16xf32>
    %153 = vector.multi_reduction <add>, %152, %cst_51 [1] : vector<16x32xf32> to vector<16xf32>
    %154 = vector.shape_cast %153 : vector<16xf32> to vector<16x1xf32>
    %cst_52 = arith.constant 3.200000e+01 : f32
    %155 = vector.broadcast %cst_52 : f32 to vector<16x1xf32>
    %156 = arith.divf %154, %155 : vector<16x1xf32>
    %157 = vector.broadcast %149 : vector<16x1xf32> to vector<16x32xf32>
    %158 = arith.subf %143, %157 : vector<16x32xf32>
    %cst_53 = arith.constant 9.99999974E-6 : f32
    %159 = vector.broadcast %cst_53 : f32 to vector<16x1xf32>
    %160 = arith.addf %156, %159 : vector<16x1xf32>
    %161 = math.rsqrt %160 : vector<16x1xf32>
    %162 = vector.broadcast %161 : vector<16x1xf32> to vector<16x32xf32>
    %163 = arith.mulf %158, %162 : vector<16x32xf32>
    %164 = vector.broadcast %144 : vector<1x32xf32> to vector<16x32xf32>
    %165 = arith.mulf %163, %164 : vector<16x32xf32>
    %166 = vector.broadcast %145 : vector<1x32xf32> to vector<16x32xf32>
    %167 = arith.addf %165, %166 : vector<16x32xf32>
    %168 = arith.truncf %167 : vector<16x32xf32> to vector<16x32xbf16>
    %c1 = arith.constant 1 : index
    %c0_54 = arith.constant 0 : index
    %c0_55 = arith.constant 0 : index
    %169 = vector.load %arg5[%c1, %c0_54, %c0_55] : memref<2x32x96xbf16, #tpu.memory_space<vmem>>, vector<1x32x96xbf16>
    %170 = vector.shape_cast %169 : vector<1x32x96xbf16> to vector<32x96xbf16>
    %cst_56 = arith.constant dense<0.000000e+00> : vector<16x96xf32>
    %171 = tpu.matmul %168, %170, %cst_56 {dimension_numbers = #tpu.dot_dimension_numbers<[1], [0], [0], [1], [0, 0, 1, 1], [], []>} : vector<16x32xbf16>, vector<32x96xbf16>, vector<16x96xf32> -> vector<16x96xf32>
    %c1_57 = arith.constant 1 : index
    %c0_58 = arith.constant 0 : index
    %c0_59 = arith.constant 0 : index
    %172 = vector.load %arg6[%c1_57, %c0_58, %c0_59] : memref<2x1x96xf32, #tpu.memory_space<vmem>>, vector<1x1x96xf32>
    %173 = vector.shape_cast %172 : vector<1x1x96xf32> to vector<1x96xf32>
    %174 = vector.broadcast %173 : vector<1x96xf32> to vector<16x96xf32>
    %175 = arith.addf %171, %174 : vector<16x96xf32>
    %176 = vector.extract_strided_slice %175 {offsets = [0, 0], sizes = [16, 8], strides = [1, 1]} : vector<16x96xf32> to vector<16x8xf32>
    %177 = vector.shape_cast %176 : vector<16x8xf32> to vector<2x8x8xf32>
    %178 = vector.extract_strided_slice %175 {offsets = [0, 8], sizes = [16, 8], strides = [1, 1]} : vector<16x96xf32> to vector<16x8xf32>
    %179 = vector.shape_cast %178 : vector<16x8xf32> to vector<2x8x8xf32>
    %180 = vector.extract_strided_slice %175 {offsets = [0, 16], sizes = [16, 8], strides = [1, 1]} : vector<16x96xf32> to vector<16x8xf32>
    %181 = vector.shape_cast %180 : vector<16x8xf32> to vector<2x8x8xf32>
    %182 = vector.extract_strided_slice %175 {offsets = [0, 24], sizes = [16, 8], strides = [1, 1]} : vector<16x96xf32> to vector<16x8xf32>
    %183 = vector.shape_cast %182 : vector<16x8xf32> to vector<2x8x8xf32>
    %184 = vector.shape_cast %177 : vector<2x8x8xf32> to vector<1x2x8x8xf32>
    %185 = vector.shape_cast %179 : vector<2x8x8xf32> to vector<1x2x8x8xf32>
    %186 = vector.shape_cast %181 : vector<2x8x8xf32> to vector<1x2x8x8xf32>
    %187 = vector.shape_cast %183 : vector<2x8x8xf32> to vector<1x2x8x8xf32>
    %188 = tpu.concatenate %184, %185, %186, %187 in 0 : vector<1x2x8x8xf32>, vector<1x2x8x8xf32>, vector<1x2x8x8xf32>, vector<1x2x8x8xf32> -> vector<4x2x8x8xf32>
    %189 = vector.shape_cast %188 : vector<4x2x8x8xf32> to vector<8x8x8xf32>
    %190 = vector.extract_strided_slice %175 {offsets = [0, 32], sizes = [16, 8], strides = [1, 1]} : vector<16x96xf32> to vector<16x8xf32>
    %191 = vector.shape_cast %190 : vector<16x8xf32> to vector<2x8x8xf32>
    %192 = vector.extract_strided_slice %175 {offsets = [0, 40], sizes = [16, 8], strides = [1, 1]} : vector<16x96xf32> to vector<16x8xf32>
    %193 = vector.shape_cast %192 : vector<16x8xf32> to vector<2x8x8xf32>
    %194 = vector.extract_strided_slice %175 {offsets = [0, 48], sizes = [16, 8], strides = [1, 1]} : vector<16x96xf32> to vector<16x8xf32>
    %195 = vector.shape_cast %194 : vector<16x8xf32> to vector<2x8x8xf32>
    %196 = vector.extract_strided_slice %175 {offsets = [0, 56], sizes = [16, 8], strides = [1, 1]} : vector<16x96xf32> to vector<16x8xf32>
    %197 = vector.shape_cast %196 : vector<16x8xf32> to vector<2x8x8xf32>
    %198 = vector.shape_cast %191 : vector<2x8x8xf32> to vector<1x2x8x8xf32>
    %199 = vector.shape_cast %193 : vector<2x8x8xf32> to vector<1x2x8x8xf32>
    %200 = vector.shape_cast %195 : vector<2x8x8xf32> to vector<1x2x8x8xf32>
    %201 = vector.shape_cast %197 : vector<2x8x8xf32> to vector<1x2x8x8xf32>
    %202 = tpu.concatenate %198, %199, %200, %201 in 0 : vector<1x2x8x8xf32>, vector<1x2x8x8xf32>, vector<1x2x8x8xf32>, vector<1x2x8x8xf32> -> vector<4x2x8x8xf32>
    %203 = vector.shape_cast %202 : vector<4x2x8x8xf32> to vector<8x8x8xf32>
    %204 = vector.extract_strided_slice %175 {offsets = [0, 64], sizes = [16, 8], strides = [1, 1]} : vector<16x96xf32> to vector<16x8xf32>
    %205 = vector.shape_cast %204 : vector<16x8xf32> to vector<2x8x8xf32>
    %206 = vector.extract_strided_slice %175 {offsets = [0, 72], sizes = [16, 8], strides = [1, 1]} : vector<16x96xf32> to vector<16x8xf32>
    %207 = vector.shape_cast %206 : vector<16x8xf32> to vector<2x8x8xf32>
    %208 = vector.extract_strided_slice %175 {offsets = [0, 80], sizes = [16, 8], strides = [1, 1]} : vector<16x96xf32> to vector<16x8xf32>
    %209 = vector.shape_cast %208 : vector<16x8xf32> to vector<2x8x8xf32>
    %210 = vector.extract_strided_slice %175 {offsets = [0, 88], sizes = [16, 8], strides = [1, 1]} : vector<16x96xf32> to vector<16x8xf32>
    %211 = vector.shape_cast %210 : vector<16x8xf32> to vector<2x8x8xf32>
    %212 = vector.shape_cast %205 : vector<2x8x8xf32> to vector<1x2x8x8xf32>
    %213 = vector.shape_cast %207 : vector<2x8x8xf32> to vector<1x2x8x8xf32>
    %214 = vector.shape_cast %209 : vector<2x8x8xf32> to vector<1x2x8x8xf32>
    %215 = vector.shape_cast %211 : vector<2x8x8xf32> to vector<1x2x8x8xf32>
    %216 = tpu.concatenate %212, %213, %214, %215 in 0 : vector<1x2x8x8xf32>, vector<1x2x8x8xf32>, vector<1x2x8x8xf32>, vector<1x2x8x8xf32> -> vector<4x2x8x8xf32>
    %217 = vector.shape_cast %216 : vector<4x2x8x8xf32> to vector<8x8x8xf32>
    %218 = arith.truncf %189 : vector<8x8x8xf32> to vector<8x8x8xbf16>
    %219 = arith.truncf %203 : vector<8x8x8xf32> to vector<8x8x8xbf16>
    "tpu.trace_start"() <{level = 10 : i32, message = "bqd,bkd->bqk"}> : () -> ()
    %cst_60 = arith.constant dense<0.000000e+00> : vector<8x8x8xf32>
    %220 = tpu.matmul %218, %219, %cst_60 {dimension_numbers = #tpu.dot_dimension_numbers<[2], [2], [1], [1], [0, 0, 0, 1, 1, 1], [0], [0]>} : vector<8x8x8xbf16>, vector<8x8x8xbf16>, vector<8x8x8xf32> -> vector<8x8x8xf32>
    "tpu.trace_stop"() : () -> ()
    %cst_61 = arith.constant dense<0xFF800000> : vector<8x8xf32>
    %221 = vector.multi_reduction <maximumf>, %220, %cst_61 [2] : vector<8x8x8xf32> to vector<8x8xf32>
    %222 = vector.shape_cast %221 : vector<8x8xf32> to vector<8x8x1xf32>
    %223 = vector.broadcast %222 : vector<8x8x1xf32> to vector<8x8x8xf32>
    %224 = arith.subf %220, %223 : vector<8x8x8xf32>
    %225 = math.exp %224 : vector<8x8x8xf32>
    %cst_62 = arith.constant dense<0.000000e+00> : vector<8x8xf32>
    %226 = vector.multi_reduction <add>, %225, %cst_62 [2] : vector<8x8x8xf32> to vector<8x8xf32>
    %227 = vector.shape_cast %226 : vector<8x8xf32> to vector<8x8x1xf32>
    %228 = tpu.reciprocal %227 {approx = true} : vector<8x8x1xf32> -> vector<8x8x1xf32>
    %229 = vector.broadcast %228 : vector<8x8x1xf32> to vector<8x8x8xf32>
    %230 = arith.mulf %225, %229 : vector<8x8x8xf32>
    %231 = arith.truncf %230 : vector<8x8x8xf32> to vector<8x8x8xbf16>
    %232 = arith.truncf %217 : vector<8x8x8xf32> to vector<8x8x8xbf16>
    "tpu.trace_start"() <{level = 10 : i32, message = "bqk,bkd->bqd"}> : () -> ()
    %cst_63 = arith.constant dense<0.000000e+00> : vector<8x8x8xf32>
    %233 = tpu.matmul %231, %232, %cst_63 {dimension_numbers = #tpu.dot_dimension_numbers<[2], [1], [1], [2], [0, 0, 0, 1, 1, 2], [0], [0]>} : vector<8x8x8xbf16>, vector<8x8x8xbf16>, vector<8x8x8xf32> -> vector<8x8x8xf32>
    "tpu.trace_stop"() : () -> ()
    %c1_64 = arith.constant 1 : index
    %c0_65 = arith.constant 0 : index
    %c0_66 = arith.constant 0 : index
    %234 = vector.load %arg7[%c1_64, %c0_65, %c0_66] : memref<2x32x32xbf16, #tpu.memory_space<vmem>>, vector<1x32x32xbf16>
    %235 = vector.shape_cast %234 : vector<1x32x32xbf16> to vector<32x32xbf16>
    %236 = vector.shape_cast %235 : vector<32x32xbf16> to vector<4x8x32xbf16>
    %237 = vector.shape_cast %236 : vector<4x8x32xbf16> to vector<4x1x8x32xbf16>
    %238 = vector.shape_cast %237 : vector<4x1x8x32xbf16> to vector<4x1x8x32xbf16>
    %239 = vector.broadcast %238 : vector<4x1x8x32xbf16> to vector<4x2x8x32xbf16>
    %240 = vector.shape_cast %239 : vector<4x2x8x32xbf16> to vector<8x8x32xbf16>
    %241 = arith.truncf %233 : vector<8x8x8xf32> to vector<8x8x8xbf16>
    "tpu.trace_start"() <{level = 10 : i32, message = "gsd,gdo->gso"}> : () -> ()
    %cst_67 = arith.constant dense<0.000000e+00> : vector<8x8x32xf32>
    %242 = tpu.matmul %241, %240, %cst_67 {dimension_numbers = #tpu.dot_dimension_numbers<[2], [1], [1], [2], [0, 0, 0, 1, 1, 2], [0], [0]>} : vector<8x8x8xbf16>, vector<8x8x32xbf16>, vector<8x8x32xf32> -> vector<8x8x32xf32>
    "tpu.trace_stop"() : () -> ()
    %243 = vector.shape_cast %242 : vector<8x8x32xf32> to vector<4x2x8x32xf32>
    %cst_68 = arith.constant dense<0.000000e+00> : vector<2x8x32xf32>
    %244 = vector.multi_reduction <add>, %243, %cst_68 [0] : vector<4x2x8x32xf32> to vector<2x8x32xf32>
    %245 = vector.shape_cast %244 : vector<2x8x32xf32> to vector<16x32xf32>
    %c1_69 = arith.constant 1 : index
    %c0_70 = arith.constant 0 : index
    %c0_71 = arith.constant 0 : index
    %246 = vector.load %arg8[%c1_69, %c0_70, %c0_71] : memref<2x1x32xf32, #tpu.memory_space<vmem>>, vector<1x1x32xf32>
    %247 = vector.shape_cast %246 : vector<1x1x32xf32> to vector<1x32xf32>
    %248 = vector.broadcast %247 : vector<1x32xf32> to vector<16x32xf32>
    %249 = arith.addf %245, %248 : vector<16x32xf32>
    %c1_72 = arith.constant 1 : index
    %c0_73 = arith.constant 0 : index
    %c0_74 = arith.constant 0 : index
    %250 = vector.load %arg13[%c1_72, %c0_73, %c0_74] : memref<2x4x32xf32, #tpu.memory_space<vmem>>, vector<1x4x32xf32>
    %251 = vector.shape_cast %250 : vector<1x4x32xf32> to vector<4x32xf32>
    %252 = arith.addf %167, %249 : vector<16x32xf32>
    %253 = vector.extract_strided_slice %251 {offsets = [0, 0], sizes = [1, 32], strides = [1, 1]} : vector<4x32xf32> to vector<1x32xf32>
    %254 = vector.extract_strided_slice %251 {offsets = [1, 0], sizes = [1, 32], strides = [1, 1]} : vector<4x32xf32> to vector<1x32xf32>
    %cst_75 = arith.constant dense<0.000000e+00> : vector<16xf32>
    %255 = vector.multi_reduction <add>, %252, %cst_75 [1] : vector<16x32xf32> to vector<16xf32>
    %256 = vector.shape_cast %255 : vector<16xf32> to vector<16x1xf32>
    %cst_76 = arith.constant 3.200000e+01 : f32
    %257 = vector.broadcast %cst_76 : f32 to vector<16x1xf32>
    %258 = arith.divf %256, %257 : vector<16x1xf32>
    %259 = vector.broadcast %258 : vector<16x1xf32> to vector<16x32xf32>
    %260 = arith.subf %252, %259 : vector<16x32xf32>
    %261 = arith.mulf %260, %260 : vector<16x32xf32>
    %cst_77 = arith.constant dense<0.000000e+00> : vector<16xf32>
    %262 = vector.multi_reduction <add>, %261, %cst_77 [1] : vector<16x32xf32> to vector<16xf32>
    %263 = vector.shape_cast %262 : vector<16xf32> to vector<16x1xf32>
    %cst_78 = arith.constant 3.200000e+01 : f32
    %264 = vector.broadcast %cst_78 : f32 to vector<16x1xf32>
    %265 = arith.divf %263, %264 : vector<16x1xf32>
    %266 = vector.broadcast %258 : vector<16x1xf32> to vector<16x32xf32>
    %267 = arith.subf %252, %266 : vector<16x32xf32>
    %cst_79 = arith.constant 9.99999974E-6 : f32
    %268 = vector.broadcast %cst_79 : f32 to vector<16x1xf32>
    %269 = arith.addf %265, %268 : vector<16x1xf32>
    %270 = math.rsqrt %269 : vector<16x1xf32>
    %271 = vector.broadcast %270 : vector<16x1xf32> to vector<16x32xf32>
    %272 = arith.mulf %267, %271 : vector<16x32xf32>
    %273 = vector.broadcast %253 : vector<1x32xf32> to vector<16x32xf32>
    %274 = arith.mulf %272, %273 : vector<16x32xf32>
    %275 = vector.broadcast %254 : vector<1x32xf32> to vector<16x32xf32>
    %276 = arith.addf %274, %275 : vector<16x32xf32>
    %277 = arith.truncf %276 : vector<16x32xf32> to vector<16x32xbf16>
    %c1_80 = arith.constant 1 : index
    %c0_81 = arith.constant 0 : index
    %c0_82 = arith.constant 0 : index
    %278 = vector.load %arg9[%c1_80, %c0_81, %c0_82] : memref<2x32x64xbf16, #tpu.memory_space<vmem>>, vector<1x32x64xbf16>
    %279 = vector.shape_cast %278 : vector<1x32x64xbf16> to vector<32x64xbf16>
    %cst_83 = arith.constant dense<0.000000e+00> : vector<16x64xf32>
    %280 = tpu.matmul %277, %279, %cst_83 {dimension_numbers = #tpu.dot_dimension_numbers<[1], [0], [0], [1], [0, 0, 1, 1], [], []>} : vector<16x32xbf16>, vector<32x64xbf16>, vector<16x64xf32> -> vector<16x64xf32>
    %c1_84 = arith.constant 1 : index
    %c0_85 = arith.constant 0 : index
    %c0_86 = arith.constant 0 : index
    %281 = vector.load %arg10[%c1_84, %c0_85, %c0_86] : memref<2x1x64xf32, #tpu.memory_space<vmem>>, vector<1x1x64xf32>
    %282 = vector.shape_cast %281 : vector<1x1x64xf32> to vector<1x64xf32>
    %283 = vector.broadcast %282 : vector<1x64xf32> to vector<16x64xf32>
    %284 = arith.addf %280, %283 : vector<16x64xf32>
    %cst_87 = arith.constant 0.000000e+00 : f32
    %285 = vector.broadcast %cst_87 : f32 to vector<16x64xf32>
    %286 = arith.maximumf %284, %285 : vector<16x64xf32>
    %287 = arith.truncf %286 : vector<16x64xf32> to vector<16x64xbf16>
    %c1_88 = arith.constant 1 : index
    %c0_89 = arith.constant 0 : index
    %c0_90 = arith.constant 0 : index
    %288 = vector.load %arg11[%c1_88, %c0_89, %c0_90] : memref<2x64x32xbf16, #tpu.memory_space<vmem>>, vector<1x64x32xbf16>
    %289 = vector.shape_cast %288 : vector<1x64x32xbf16> to vector<64x32xbf16>
    %cst_91 = arith.constant dense<0.000000e+00> : vector<16x32xf32>
    %290 = tpu.matmul %287, %289, %cst_91 {dimension_numbers = #tpu.dot_dimension_numbers<[1], [0], [0], [1], [0, 0, 1, 1], [], []>} : vector<16x64xbf16>, vector<64x32xbf16>, vector<16x32xf32> -> vector<16x32xf32>
    %c1_92 = arith.constant 1 : index
    %c0_93 = arith.constant 0 : index
    %c0_94 = arith.constant 0 : index
    %291 = vector.load %arg12[%c1_92, %c0_93, %c0_94] : memref<2x1x32xf32, #tpu.memory_space<vmem>>, vector<1x1x32xf32>
    %292 = vector.shape_cast %291 : vector<1x1x32xf32> to vector<1x32xf32>
    %293 = vector.broadcast %292 : vector<1x32xf32> to vector<16x32xf32>
    %294 = arith.addf %290, %293 : vector<16x32xf32>
    %295 = arith.addf %276, %294 : vector<16x32xf32>
    %296 = vector.extract_strided_slice %251 {offsets = [2, 0], sizes = [1, 32], strides = [1, 1]} : vector<4x32xf32> to vector<1x32xf32>
    %297 = vector.extract_strided_slice %251 {offsets = [3, 0], sizes = [1, 32], strides = [1, 1]} : vector<4x32xf32> to vector<1x32xf32>
    %cst_95 = arith.constant dense<0.000000e+00> : vector<16xf32>
    %298 = vector.multi_reduction <add>, %295, %cst_95 [1] : vector<16x32xf32> to vector<16xf32>
    %299 = vector.shape_cast %298 : vector<16xf32> to vector<16x1xf32>
    %cst_96 = arith.constant 3.200000e+01 : f32
    %300 = vector.broadcast %cst_96 : f32 to vector<16x1xf32>
    %301 = arith.divf %299, %300 : vector<16x1xf32>
    %302 = vector.broadcast %301 : vector<16x1xf32> to vector<16x32xf32>
    %303 = arith.subf %295, %302 : vector<16x32xf32>
    %304 = arith.mulf %303, %303 : vector<16x32xf32>
    %cst_97 = arith.constant dense<0.000000e+00> : vector<16xf32>
    %305 = vector.multi_reduction <add>, %304, %cst_97 [1] : vector<16x32xf32> to vector<16xf32>
    %306 = vector.shape_cast %305 : vector<16xf32> to vector<16x1xf32>
    %cst_98 = arith.constant 3.200000e+01 : f32
    %307 = vector.broadcast %cst_98 : f32 to vector<16x1xf32>
    %308 = arith.divf %306, %307 : vector<16x1xf32>
    %309 = vector.broadcast %301 : vector<16x1xf32> to vector<16x32xf32>
    %310 = arith.subf %295, %309 : vector<16x32xf32>
    %cst_99 = arith.constant 9.99999974E-6 : f32
    %311 = vector.broadcast %cst_99 : f32 to vector<16x1xf32>
    %312 = arith.addf %308, %311 : vector<16x1xf32>
    %313 = math.rsqrt %312 : vector<16x1xf32>
    %314 = vector.broadcast %313 : vector<16x1xf32> to vector<16x32xf32>
    %315 = arith.mulf %310, %314 : vector<16x32xf32>
    %316 = vector.broadcast %296 : vector<1x32xf32> to vector<16x32xf32>
    %317 = arith.mulf %315, %316 : vector<16x32xf32>
    %318 = vector.broadcast %297 : vector<1x32xf32> to vector<16x32xf32>
    %319 = arith.addf %317, %318 : vector<16x32xf32>
    %320 = vector.shape_cast %319 : vector<16x32xf32> to vector<2x8x32xf32>
    %321 = vector.extract_strided_slice %320 {offsets = [0, 0, 0], sizes = [2, 1, 32], strides = [1, 1, 1]} : vector<2x8x32xf32> to vector<2x1x32xf32>
    %322 = vector.shape_cast %321 : vector<2x1x32xf32> to vector<2x32xf32>
    %323 = arith.truncf %322 : vector<2x32xf32> to vector<2x32xbf16>
    %c0_100 = arith.constant 0 : index
    %c0_101 = arith.constant 0 : index
    %324 = vector.load %arg14[%c0_100, %c0_101] : memref<32x32xbf16, #tpu.memory_space<vmem>>, vector<32x32xbf16>
    %cst_102 = arith.constant dense<0.000000e+00> : vector<2x32xf32>
    %325 = tpu.matmul %323, %324, %cst_102 {dimension_numbers = #tpu.dot_dimension_numbers<[1], [0], [0], [1], [0, 0, 1, 1], [], []>} : vector<2x32xbf16>, vector<32x32xbf16>, vector<2x32xf32> -> vector<2x32xf32>
    %c0_103 = arith.constant 0 : index
    %c0_104 = arith.constant 0 : index
    %326 = vector.load %arg15[%c0_103, %c0_104] : memref<1x32xf32, #tpu.memory_space<vmem>>, vector<1x32xf32>
    %327 = vector.broadcast %326 : vector<1x32xf32> to vector<2x32xf32>
    %328 = arith.addf %325, %327 : vector<2x32xf32>
    %329 = math.tanh %328 : vector<2x32xf32>
    %c0_105 = arith.constant 0 : index
    %c0_106 = arith.constant 0 : index
    %330 = vector.load %arg17[%c0_105, %c0_106] : memref<2x32xf32, #tpu.memory_space<vmem>>, vector<2x32xf32>
    tpu.vector_store %arg17[%c0_105, %c0_106], %329 {strides = array<i32>} : memref<2x32xf32, #tpu.memory_space<vmem>>, vector<2x32xf32>,
    %331 = tpu.iota {dimensions = array<i32: 1>} : vector<6x16xi32>
    %c0_107 = arith.constant 0 : index
    %c0_108 = arith.constant 0 : index
    %332 = vector.load %arg2[%c0_107, %c0_108] : memref<6x1xi32, #tpu.memory_space<vmem>>, vector<6x1xi32>
    %333 = vector.broadcast %332 : vector<6x1xi32> to vector<6x16xi32>
    %334 = arith.cmpi eq, %333, %331 : vector<6x16xi32>
    %cst_109 = arith.constant 1.000000e+00 : f32
    %cst_110 = arith.constant 0.000000e+00 : f32
    %335 = vector.broadcast %cst_109 : f32 to vector<6x16xf32>
    %336 = vector.broadcast %cst_110 : f32 to vector<6x16xf32>
    %337 = arith.select %334, %335, %336 : vector<6x16xi1>, vector<6x16xf32>
    %cst_111 = arith.constant dense<0.000000e+00> : vector<6x32xf32>
    %338 = tpu.matmul %337, %319, %cst_111 {dimension_numbers = #tpu.dot_dimension_numbers<[1], [0], [0], [1], [0, 0, 1, 1], [], []>} : vector<6x16xf32>, vector<16x32xf32>, vector<6x32xf32> -> vector<6x32xf32>
    %c0_112 = arith.constant 0 : index
    %c0_113 = arith.constant 0 : index
    %339 = vector.load %arg16[%c0_112, %c0_113] : memref<6x32xf32, #tpu.memory_space<vmem>>, vector<6x32xf32>
    tpu.vector_store %arg16[%c0_112, %c0_113], %338 {strides = array<i32>} : memref<6x32xf32, #tpu.memory_space<vmem>>, vector<6x32xf32>,
    return
  }
  func.func @transform_0(%arg0: i32) -> (i32, i32) {
    %c0_i32 = arith.constant 0 : i32
    %c0_i32_0 = arith.constant 0 : i32
    %c0_i32_1 = arith.constant 0 : i32
    return %c0_i32, %c0_i32_0 : i32, i32
  }
  func.func @transform_1(%arg0: i32) -> (i32, i32) {
    %c0_i32 = arith.constant 0 : i32
    %c0_i32_0 = arith.constant 0 : i32
    %c0_i32_1 = arith.constant 0 : i32
    return %c0_i32, %c0_i32_0 : i32, i32
  }
  func.func @transform_2(%arg0: i32) -> (i32, i32) {
    %c0_i32 = arith.constant 0 : i32
    %c0_i32_0 = arith.constant 0 : i32
    %c0_i32_1 = arith.constant 0 : i32
    return %c0_i32, %c0_i32_0 : i32, i32
  }
  func.func @transform_3(%arg0: i32) -> (i32, i32) {
    %c0_i32 = arith.constant 0 : i32
    %c0_i32_0 = arith.constant 0 : i32
    %c0_i32_1 = arith.constant 0 : i32
    return %c0_i32, %c0_i32_0 : i32, i32
  }
  func.func @transform_4(%arg0: i32) -> (i32, i32, i32) {
    %c0_i32 = arith.constant 0 : i32
    %c0_i32_0 = arith.constant 0 : i32
    %c0_i32_1 = arith.constant 0 : i32
    %c0_i32_2 = arith.constant 0 : i32
    return %c0_i32, %c0_i32_0, %c0_i32_1 : i32, i32, i32
  }
  func.func @transform_5(%arg0: i32) -> (i32, i32, i32) {
    %c0_i32 = arith.constant 0 : i32
    %c0_i32_0 = arith.constant 0 : i32
    %c0_i32_1 = arith.constant 0 : i32
    %c0_i32_2 = arith.constant 0 : i32
    return %c0_i32, %c0_i32_0, %c0_i32_1 : i32, i32, i32
  }
  func.func @transform_6(%arg0: i32) -> (i32, i32, i32) {
    %c0_i32 = arith.constant 0 : i32
    %c0_i32_0 = arith.constant 0 : i32
    %c0_i32_1 = arith.constant 0 : i32
    %c0_i32_2 = arith.constant 0 : i32
    return %c0_i32, %c0_i32_0, %c0_i32_1 : i32, i32, i32
  }
  func.func @transform_7(%arg0: i32) -> (i32, i32, i32) {
    %c0_i32 = arith.constant 0 : i32
    %c0_i32_0 = arith.constant 0 : i32
    %c0_i32_1 = arith.constant 0 : i32
    %c0_i32_2 = arith.constant 0 : i32
    return %c0_i32, %c0_i32_0, %c0_i32_1 : i32, i32, i32
  }
  func.func @transform_8(%arg0: i32) -> (i32, i32, i32) {
    %c0_i32 = arith.constant 0 : i32
    %c0_i32_0 = arith.constant 0 : i32
    %c0_i32_1 = arith.constant 0 : i32
    %c0_i32_2 = arith.constant 0 : i32
    return %c0_i32, %c0_i32_0, %c0_i32_1 : i32, i32, i32
  }
  func.func @transform_9(%arg0: i32) -> (i32, i32, i32) {
    %c0_i32 = arith.constant 0 : i32
    %c0_i32_0 = arith.constant 0 : i32
    %c0_i32_1 = arith.constant 0 : i32
    %c0_i32_2 = arith.constant 0 : i32
    return %c0_i32, %c0_i32_0, %c0_i32_1 : i32, i32, i32
  }
  func.func @transform_10(%arg0: i32) -> (i32, i32, i32) {
    %c0_i32 = arith.constant 0 : i32
    %c0_i32_0 = arith.constant 0 : i32
    %c0_i32_1 = arith.constant 0 : i32
    %c0_i32_2 = arith.constant 0 : i32
    return %c0_i32, %c0_i32_0, %c0_i32_1 : i32, i32, i32
  }
  func.func @transform_11(%arg0: i32) -> (i32, i32, i32) {
    %c0_i32 = arith.constant 0 : i32
    %c0_i32_0 = arith.constant 0 : i32
    %c0_i32_1 = arith.constant 0 : i32
    %c0_i32_2 = arith.constant 0 : i32
    return %c0_i32, %c0_i32_0, %c0_i32_1 : i32, i32, i32
  }
  func.func @transform_12(%arg0: i32) -> (i32, i32, i32) {
    %c0_i32 = arith.constant 0 : i32
    %c0_i32_0 = arith.constant 0 : i32
    %c0_i32_1 = arith.constant 0 : i32
    %c0_i32_2 = arith.constant 0 : i32
    return %c0_i32, %c0_i32_0, %c0_i32_1 : i32, i32, i32
  }
  func.func @transform_13(%arg0: i32) -> (i32, i32) {
    %c0_i32 = arith.constant 0 : i32
    %c0_i32_0 = arith.constant 0 : i32
    %c0_i32_1 = arith.constant 0 : i32
    return %c0_i32, %c0_i32_0 : i32, i32
  }
  func.func @transform_14(%arg0: i32) -> (i32, i32) {
    %c0_i32 = arith.constant 0 : i32
    %c0_i32_0 = arith.constant 0 : i32
    %c0_i32_1 = arith.constant 0 : i32
    return %c0_i32, %c0_i32_0 : i32, i32
  }
  func.func @transform_15(%arg0: i32) -> (i32, i32) {
    %c0_i32 = arith.constant 0 : i32
    %c0_i32_0 = arith.constant 0 : i32
    %c0_i32_1 = arith.constant 0 : i32
    return %c0_i32, %c0_i32_0 : i32, i32
  }
  func.func @transform_16(%arg0: i32) -> (i32, i32) {
    %c0_i32 = arith.constant 0 : i32
    %c0_i32_0 = arith.constant 0 : i32
    %c0_i32_1 = arith.constant 0 : i32
    return %c0_i32, %c0_i32_0 : i32, i32
  }
}

</mosaic_0001>

<llo_original>
// kernel: tpu_custom_call.1
$region0: #{tpu_custom_call.1}
  #allocation0 [shape = 'u32[]', space=smem, size = 0x4, offset = 0x4, fixed_abs, tag = 'smem constant byte address 0x4 - core index']
  #allocation1 [shape = 'u32[72,128]{1,0:T(1,128)}', space=vmem, size = 0x9000, scoped, tag = 'internal scratch']
  %s0 = inlined_call_operand.vmem [shape: s32[16,1], index: 0, kind: input, shape index: {}]
  %s1 = inlined_call_operand.vmem [shape: s32[6,1], index: 1, kind: input, shape index: {}]
  %s2 = inlined_call_operand.vmem [shape: bf16[50,32], index: 2, kind: input, shape index: {}]
  %s3 = inlined_call_operand.hbm [shape: f32[8,32], index: 3, kind: input, shape index: {}]
  %s4 = inlined_call_operand.vmem [shape: bf16[2,32,96], index: 4, kind: input, shape index: {}]
  %s5 = inlined_call_operand.hbm [shape: f32[2,1,96], index: 5, kind: input, shape index: {}]
  %s6 = inlined_call_operand.vmem [shape: bf16[2,32,32], index: 6, kind: input, shape index: {}]
  %s7 = inlined_call_operand.vmem [shape: f32[2,1,32], index: 7, kind: input, shape index: {}]
  %s8 = inlined_call_operand.vmem [shape: bf16[2,32,64], index: 8, kind: input, shape index: {}]
  %s9 = inlined_call_operand.vmem [shape: f32[2,1,64], index: 9, kind: input, shape index: {}]
  %s10 = inlined_call_operand.vmem [shape: bf16[2,64,32], index: 10, kind: input, shape index: {}]
  %s11 = inlined_call_operand.vmem [shape: f32[2,1,32], index: 11, kind: input, shape index: {}]
  %s12 = inlined_call_operand.vmem [shape: f32[2,4,32], index: 12, kind: input, shape index: {}]
  %s13 = inlined_call_operand.vmem [shape: bf16[32,32], index: 13, kind: input, shape index: {}]
  %s14 = inlined_call_operand.vmem [shape: f32[1,32], index: 14, kind: input, shape index: {}]
  %s15 = inlined_call_operand.hbm [shape: f32[6,32], index: 15, kind: output, shape index: {0}]
  %s16 = inlined_call_operand.hbm [shape: f32[2,32], index: 16, kind: output, shape index: {1}]
  %17 = xla_tuple %s15, %s16
  %s18 = sld [smem:[#allocation0]]
  $region86: #{tpu_custom_call.1} parent=0
    _
  %s20 = ssub.s32 1, %s18
  %s21 = scalar_select 0, %s20, %s18
  $region1: #{tpu_custom_call.1} parent=0
    #allocation2 [shape = 'u8[4096]{0}', space=vmem, size = 0x1000, scoped, tag = 'input window, operand 3, single buffered']
    #allocation3 [shape = 's32[1]{0}', space=sflag, size = 0x4, scoped, tag = 'scoped memory for tpu_custom_call.1']
    #allocation4 [shape = 's32[1]{0}', space=sflag, size = 0x4, scoped, tag = 'scoped memory for tpu_custom_call.1']
    #allocation5 [shape = 'u8[1024]{0}', space=vmem, size = 0x400, scoped, tag = 'input window, operand 5, single buffered']
    #allocation6 [shape = 's32[1]{0}', space=sflag, size = 0x4, scoped, tag = 'scoped memory for tpu_custom_call.1']
    #allocation7 [shape = 'u8[4096]{0}', space=vmem, size = 0x1000, scoped, tag = 'output window, operand 0, single buffered']
    #allocation8 [shape = 'u8[1024]{0}', space=vmem, size = 0x400, scoped, tag = 'output window, operand 1, single buffered']
    #allocation9 [shape = 's32[1]{0}', space=sflag, size = 0x4, scoped, tag = 'scoped memory for tpu_custom_call.1']
    %22 = vsyncpa [#allocation3], 0
    %23 = vsyncpa [#allocation6], 0
    %24 = vsyncpa [#allocation4], 0
    %25 = vsyncpa [#allocation9], 0
    // Predicated region
    $region2: #{tpu_custom_call.1} parent=1 // pred_check
      _
    $region3: #{tpu_custom_call.1} parent=1 // pred_check_branch
      %27 = sbr.rel (0) target = $region5
    $region4: #{tpu_custom_call.1} parent=1 // pred_region
      _
    $region5: #{tpu_custom_call.1} parent=1 // pred_fallthru
      _
    // Predicated region
    $region6: #{tpu_custom_call.1} parent=1 // pred_check
      _
    $region7: #{tpu_custom_call.1} parent=1 // pred_check_branch
      %29 = sbr.rel (0) target = $region9
    $region8: #{tpu_custom_call.1} parent=1 // pred_region
      _
    $region9: #{tpu_custom_call.1} parent=1 // pred_fallthru
      _
    // Predicated region
    $region10: #{tpu_custom_call.1} parent=1 // pred_check
      _
    $region11: #{tpu_custom_call.1} parent=1 // pred_check_branch
      %31 = sbr.rel (0) target = $region13
    $region12: #{tpu_custom_call.1} parent=1 // pred_region
      _
    $region13: #{tpu_custom_call.1} parent=1 // pred_fallthru
      _
    // Predicated region
    $region14: #{tpu_custom_call.1} parent=1 // pred_check
      _
    $region15: #{tpu_custom_call.1} parent=1 // pred_check_branch
      %33 = sbr.rel (0) target = $region17
    $region16: #{tpu_custom_call.1} parent=1 // pred_region
      %35 = vsyncadd [#allocation3], 0
      %s37 = sshll.u32 %s3, 4
      %s38 = int_to_ptr.hbm [resolvable:$true] %s37
      %s39 = sshll.u32 [#allocation2], 4
      %s40 = int_to_ptr.vmem [resolvable:$true] %s39
      %42 = dma.hbm_to_vmem [thread:$0]  %s38, 128, %s40, [#allocation3]
    $region17: #{tpu_custom_call.1} parent=1 // pred_fallthru
      _
    // Predicated region
    $region18: #{tpu_custom_call.1} parent=1 // pred_check
      _
    $region19: #{tpu_custom_call.1} parent=1 // pred_check_branch
      %44 = sbr.rel (0) target = $region21
    $region20: #{tpu_custom_call.1} parent=1 // pred_region
      _
    $region21: #{tpu_custom_call.1} parent=1 // pred_fallthru
      _
    // Predicated region
    $region22: #{tpu_custom_call.1} parent=1 // pred_check
      _
    $region23: #{tpu_custom_call.1} parent=1 // pred_check_branch
      %46 = sbr.rel (0) target = $region25
    $region24: #{tpu_custom_call.1} parent=1 // pred_region
      %48 = vsyncadd [#allocation6], 0
      %s49 = sshll.u32 %s5, 4
      %s50 = int_to_ptr.hbm [resolvable:$true] %s49
      %s51 = sshll.u32 [#allocation5], 4
      %s52 = int_to_ptr.vmem [resolvable:$true] %s51
      %57 = dma.hbm_to_vmem [thread:$0]  %s50, 32, %s52, [#allocation6], 16, 16, 1
    $region25: #{tpu_custom_call.1} parent=1 // pred_fallthru
      _
    // Predicated region
    $region26: #{tpu_custom_call.1} parent=1 // pred_check
      _
    $region27: #{tpu_custom_call.1} parent=1 // pred_check_branch
      %59 = sbr.rel (0) target = $region29
    $region28: #{tpu_custom_call.1} parent=1 // pred_region
      _
    $region29: #{tpu_custom_call.1} parent=1 // pred_fallthru
      _
    // Predicated region
    $region30: #{tpu_custom_call.1} parent=1 // pred_check
      _
    $region31: #{tpu_custom_call.1} parent=1 // pred_check_branch
      %61 = sbr.rel (0) target = $region33
    $region32: #{tpu_custom_call.1} parent=1 // pred_region
      _
    $region33: #{tpu_custom_call.1} parent=1 // pred_fallthru
      _
    // Predicated region
    $region34: #{tpu_custom_call.1} parent=1 // pred_check
      _
    $region35: #{tpu_custom_call.1} parent=1 // pred_check_branch
      %63 = sbr.rel (0) target = $region37
    $region36: #{tpu_custom_call.1} parent=1 // pred_region
      _
    $region37: #{tpu_custom_call.1} parent=1 // pred_fallthru
      _
    // Predicated region
    $region38: #{tpu_custom_call.1} parent=1 // pred_check
      _
    $region39: #{tpu_custom_call.1} parent=1 // pred_check_branch
      %65 = sbr.rel (0) target = $region41
    $region40: #{tpu_custom_call.1} parent=1 // pred_region
      _
    $region41: #{tpu_custom_call.1} parent=1 // pred_fallthru
      _
    // Predicated region
    $region42: #{tpu_custom_call.1} parent=1 // pred_check
      _
    $region43: #{tpu_custom_call.1} parent=1 // pred_check_branch
      %67 = sbr.rel (0) target = $region45
    $region44: #{tpu_custom_call.1} parent=1 // pred_region
      _
    $region45: #{tpu_custom_call.1} parent=1 // pred_fallthru
      _
    // Predicated region
    $region46: #{tpu_custom_call.1} parent=1 // pred_check
      _
    $region47: #{tpu_custom_call.1} parent=1 // pred_check_branch
      %69 = sbr.rel (0) target = $region49
    $region48: #{tpu_custom_call.1} parent=1 // pred_region
      _
    $region49: #{tpu_custom_call.1} parent=1 // pred_fallthru
      _
    // Predicated region
    $region50: #{tpu_custom_call.1} parent=1 // pred_check
      _
    $region51: #{tpu_custom_call.1} parent=1 // pred_check_branch
      %71 = sbr.rel (0) target = $region53
    $region52: #{tpu_custom_call.1} parent=1 // pred_region
      _
    $region53: #{tpu_custom_call.1} parent=1 // pred_fallthru
      _
    // Predicated region
    $region54: #{tpu_custom_call.1} parent=1 // pred_check
      _
    $region55: #{tpu_custom_call.1} parent=1 // pred_check_branch
      %73 = sbr.rel (0) target = $region57
    $region56: #{tpu_custom_call.1} parent=1 // pred_region
      _
    $region57: #{tpu_custom_call.1} parent=1 // pred_fallthru
      _
    // Predicated region
    $region58: #{tpu_custom_call.1} parent=1 // pred_check
      _
    $region59: #{tpu_custom_call.1} parent=1 // pred_check_branch
      %75 = sbr.rel (0) target = $region61
    $region60: #{tpu_custom_call.1} parent=1 // pred_region
      _
    $region61: #{tpu_custom_call.1} parent=1 // pred_fallthru
      _
    // Predicated region
    $region62: #{tpu_custom_call.1} parent=1 // pred_check
      _
    $region63: #{tpu_custom_call.1} parent=1 // pred_check_branch
      %77 = sbr.rel (0) target = $region65
    $region64: #{tpu_custom_call.1} parent=1 // pred_region
      %79 = dma.done [#allocation3], 128
    $region65: #{tpu_custom_call.1} parent=1 // pred_fallthru
      _
    // Predicated region
    $region66: #{tpu_custom_call.1} parent=1 // pred_check
      _
    $region67: #{tpu_custom_call.1} parent=1 // pred_check_branch
      %81 = sbr.rel (0) target = $region69
    $region68: #{tpu_custom_call.1} parent=1 // pred_region
      %83 = dma.done [#allocation6], 32
    $region69: #{tpu_custom_call.1} parent=1 // pred_fallthru
      _
    %v85 = vlaneseq
    %v86 = vand.u32 %v85, 127
    %v87 = vld [vmem:[%s0] sm:$0xff]
    %v88 = vld [vmem:[%s0 + $0x8] sm:$0xff]
    %89 = vset.pattern.permute.xlu0 0
    %90 = vperm.xlu0 %89, %v87
    %v91 = vpop.permute.xlu0 %90
    %92 = vset.pattern.permute.xlu0 0
    %93 = vperm.xlu0 %92, %v88
    %v94 = vpop.permute.xlu0 %93
    %vm95 = vcmp.eq.s32.totalorder %v91, %v86
    %vm96 = vcmp.eq.s32.totalorder %v94, %v86
    %v97 = vsel %vm95, 1.0, 0.0
    %v98 = vsel %vm96, 1.0, 0.0
    %v99 = vpack.c.bf16 %v98, %v97
    %v100 = vld [vmem:[%s2] sm:$0xf]
    %v101 = vld [vmem:[%s2 + $0x4] sm:$0xf]
    %v102 = vld [vmem:[%s2 + $0x8] sm:$0xf]
    %v103 = vld [vmem:[%s2 + $0xc] sm:$0xf]
    %v104 = vld [vmem:[%s2 + $0x10] sm:$0xf]
    %v105 = vld [vmem:[%s2 + $0x14] sm:$0xf]
    %v106 = vld [vmem:[%s2 + $0x18] sm:$0x1]
    %v114 = vunpack.c.l.b16 %v100
    %v115 = vunpack.c.l.b16 %v101
    %v116 = vunpack.c.l.b16 %v102
    %v117 = vunpack.c.l.b16 %v103
    %v118 = vunpack.c.l.b16 %v104
    %v119 = vunpack.c.l.b16 %v105
    %v120 = vunpack.c.l.b16 %v106
    %v121 = vpack.c.b16 %v115, %v114
    %v122 = vpack.c.b16 %v117, %v116
    %v123 = vpack.c.b16 %v119, %v118
    %v124 = vpack.c.b16 %v120, %v120
    %vm128 = vcmask 408576
    %v130 = vsel %vm128, %v99, 0
    %vm132 = vcmask 1040384
    %v134 = vsel %vm132, %v124, 0
    %136 = vmatpush.bf16.msra.mxu0 0
    %137 = vmatpush.bf16.msra.mxu0 0
    %138 = vmatpush.bf16.msra.mxu0 0
    %139 = vmatpush.bf16.msra.mxu0 0
    %140 = vmatpush.bf16.msra.mxu0 %v134
    %141 = vmatpush.bf16.msra.mxu0 %v123
    %142 = vmatpush.bf16.msra.mxu0 %v122
    %143 = vmatpush.bf16.msra.mxu0 %v121
    %144 = vmatmul.bf16.gmra.mxu0 %v130
    %v145 = vpop.f32.mrf.mxu0
    %v146 = vadd.f32 0.0, %v145
    %v147 = vpop.f32.mrf.mxu0
    %v148 = vadd.f32 0.0, %v147
    %149 = vdwg.mxu0
    %v150 = vld [vmem:[#allocation2] sm:$0xff]
    %v151 = vadd.f32 %v146, %v150
    %v152 = vadd.f32 %v148, %v150
    %v153 = vpack.c.bf16 %v152, %v151
    %v154 = vld [vmem:[%s4] sm:$0xf]
    %v155 = vld [vmem:[%s4 + $0x4] sm:$0xf]
    %v156 = vld [vmem:[%s4 + $0x8] sm:$0xf]
    %v157 = vld [vmem:[%s4 + $0xc] sm:$0xf]
    %v158 = vld [vmem:[#allocation5] sm:$0x1]
    %v160 = vperm.slane %v158, 0
    %v166 = vunpack.c.l.b16 %v154
    %v167 = vunpack.c.l.b16 %v155
    %v168 = vunpack.c.l.b16 %v156
    %v169 = vunpack.c.l.b16 %v157
    %v170 = vpack.c.b16 %v167, %v166
    %v171 = vpack.c.b16 %v169, %v168
    %vm174 = vcmask 261120
    %v176 = vsel %vm174, %v153, 0
    %178 = vmatpush.bf16.msra.mxu0 0
    %179 = vmatpush.bf16.msra.mxu0 0
    %180 = vmatpush.bf16.msra.mxu0 0
    %181 = vmatpush.bf16.msra.mxu0 0
    %182 = vmatpush.bf16.msra.mxu0 0
    %183 = vmatpush.bf16.msra.mxu0 0
    %184 = vmatpush.bf16.msra.mxu0 %v171
    %185 = vmatpush.bf16.msra.mxu0 %v170
    %186 = vmatmul.bf16.gmra.mxu0 %v176
    %v187 = vpop.f32.mrf.mxu0
    %v188 = vadd.f32 %v160, %v187
    %v189 = vpop.f32.mrf.mxu0
    %v190 = vadd.f32 %v160, %v189
    %191 = vdwg.mxu0
    %194 = vrot.lane.b32.xlu0 %v188, 120
    %v195 = vpop.permute.xlu0 %194
    %196 = vrot.lane.b32.xlu0 %v190, 120
    %v197 = vpop.permute.xlu0 %196
    %200 = vrot.lane.b32.xlu0 %v188, 112
    %v201 = vpop.permute.xlu0 %200
    %202 = vrot.lane.b32.xlu0 %v190, 112
    %v203 = vpop.permute.xlu0 %202
    %206 = vrot.lane.b32.xlu0 %v188, 104
    %v207 = vpop.permute.xlu0 %206
    %208 = vrot.lane.b32.xlu0 %v190, 104
    %v209 = vpop.permute.xlu0 %208
    %v212 = vpack.c.bf16 %v188, %v188
    %v213 = vpack.c.bf16 %v190, %v190
    %v214 = vpack.c.bf16 %v195, %v195
    %v215 = vpack.c.bf16 %v197, %v197
    %v216 = vpack.c.bf16 %v201, %v201
    %v217 = vpack.c.bf16 %v203, %v203
    %v218 = vpack.c.bf16 %v207, %v207
    %v219 = vpack.c.bf16 %v209, %v209
    %v221 = vunpack.c.l.b16 %v212
    %v222 = vpack.c.b16 %v221, %v221
    %223 = vrot.lane.b32.xlu0 %v222, 96
    %v224 = vpop.permute.xlu0 %223
    %vm225 = vcmask 64512
    %v227 = vsel %vm225, %v212, 0
    %v230 = vsel %vm225, %v224, 0
    %232 = vmatpush.bf16.xpose.msra.mxu0 0
    %233 = vmatpush.bf16.xpose.msra.mxu0 0
    %234 = vmatpush.bf16.xpose.msra.mxu0 0
    %235 = vmatpush.bf16.xpose.msra.mxu0 0
    %236 = vmatpush.bf16.xpose.msra.mxu0 0
    %237 = vmatpush.bf16.xpose.msra.mxu0 0
    %238 = vmatpush.bf16.xpose.msra.mxu0 0
    %239 = vmatpush.bf16.xpose.msra.mxu0 %v230
    %240 = vmatmul.bf16.gmra.mxu0 %v227
    %v241 = vpop.f32.mrf.mxu0
    %v242 = vadd.f32 0.0, %v241
    %v243 = vpop.f32.mrf.mxu0
    %244 = vdwg.mxu0
    %v246 = vunpack.c.l.b16 %v213
    %v247 = vpack.c.b16 %v246, %v246
    %248 = vrot.lane.b32.xlu0 %v247, 96
    %v249 = vpop.permute.xlu0 %248
    %v251 = vsel %vm225, %v213, 0
    %v254 = vsel %vm225, %v249, 0
    %256 = vmatpush.bf16.xpose.msra.mxu0 0
    %257 = vmatpush.bf16.xpose.msra.mxu0 0
    %258 = vmatpush.bf16.xpose.msra.mxu0 0
    %259 = vmatpush.bf16.xpose.msra.mxu0 0
    %260 = vmatpush.bf16.xpose.msra.mxu0 0
    %261 = vmatpush.bf16.xpose.msra.mxu0 0
    %262 = vmatpush.bf16.xpose.msra.mxu0 0
    %263 = vmatpush.bf16.xpose.msra.mxu0 %v254
    %264 = vmatmul.bf16.gmra.mxu0 %v251
    %v265 = vpop.f32.mrf.mxu0
    %v266 = vadd.f32 0.0, %v265
    %v267 = vpop.f32.mrf.mxu0
    %268 = vdwg.mxu0
    %v270 = vunpack.c.l.b16 %v214
    %v271 = vpack.c.b16 %v270, %v270
    %272 = vrot.lane.b32.xlu0 %v271, 96
    %v273 = vpop.permute.xlu0 %272
    %v275 = vsel %vm225, %v214, 0
    %v278 = vsel %vm225, %v273, 0
    %280 = vmatpush.bf16.xpose.msra.mxu0 0
    %281 = vmatpush.bf16.xpose.msra.mxu0 0
    %282 = vmatpush.bf16.xpose.msra.mxu0 0
    %283 = vmatpush.bf16.xpose.msra.mxu0 0
    %284 = vmatpush.bf16.xpose.msra.mxu0 0
    %285 = vmatpush.bf16.xpose.msra.mxu0 0
    %286 = vmatpush.bf16.xpose.msra.mxu0 0
    %287 = vmatpush.bf16.xpose.msra.mxu0 %v278
    %288 = vmatmul.bf16.gmra.mxu0 %v275
    %v289 = vpop.f32.mrf.mxu0
    %v290 = vadd.f32 0.0, %v289
    %v291 = vpop.f32.mrf.mxu0
    %292 = vdwg.mxu0
    %v294 = vunpack.c.l.b16 %v215
    %v295 = vpack.c.b16 %v294, %v294
    %296 = vrot.lane.b32.xlu0 %v295, 96
    %v297 = vpop.permute.xlu0 %296
    %v299 = vsel %vm225, %v215, 0
    %v302 = vsel %vm225, %v297, 0
    %304 = vmatpush.bf16.xpose.msra.mxu0 0
    %305 = vmatpush.bf16.xpose.msra.mxu0 0
    %306 = vmatpush.bf16.xpose.msra.mxu0 0
    %307 = vmatpush.bf16.xpose.msra.mxu0 0
    %308 = vmatpush.bf16.xpose.msra.mxu0 0
    %309 = vmatpush.bf16.xpose.msra.mxu0 0
    %310 = vmatpush.bf16.xpose.msra.mxu0 0
    %311 = vmatpush.bf16.xpose.msra.mxu0 %v302
    %312 = vmatmul.bf16.gmra.mxu0 %v299
    %v313 = vpop.f32.mrf.mxu0
    %v314 = vadd.f32 0.0, %v313
    %v315 = vpop.f32.mrf.mxu0
    %316 = vdwg.mxu0
    %v318 = vunpack.c.l.b16 %v216
    %v319 = vpack.c.b16 %v318, %v318
    %320 = vrot.lane.b32.xlu0 %v319, 96
    %v321 = vpop.permute.xlu0 %320
    %v323 = vsel %vm225, %v216, 0
    %v326 = vsel %vm225, %v321, 0
    %328 = vmatpush.bf16.xpose.msra.mxu0 0
    %329 = vmatpush.bf16.xpose.msra.mxu0 0
    %330 = vmatpush.bf16.xpose.msra.mxu0 0
    %331 = vmatpush.bf16.xpose.msra.mxu0 0
    %332 = vmatpush.bf16.xpose.msra.mxu0 0
    %333 = vmatpush.bf16.xpose.msra.mxu0 0
    %334 = vmatpush.bf16.xpose.msra.mxu0 0
    %335 = vmatpush.bf16.xpose.msra.mxu0 %v326
    %336 = vmatmul.bf16.gmra.mxu0 %v323
    %v337 = vpop.f32.mrf.mxu0
    %v338 = vadd.f32 0.0, %v337
    %v339 = vpop.f32.mrf.mxu0
    %340 = vdwg.mxu0
    %v342 = vunpack.c.l.b16 %v217
    %v343 = vpack.c.b16 %v342, %v342
    %344 = vrot.lane.b32.xlu0 %v343, 96
    %v345 = vpop.permute.xlu0 %344
    %v347 = vsel %vm225, %v217, 0
    %v350 = vsel %vm225, %v345, 0
    %352 = vmatpush.bf16.xpose.msra.mxu0 0
    %353 = vmatpush.bf16.xpose.msra.mxu0 0
    %354 = vmatpush.bf16.xpose.msra.mxu0 0
    %355 = vmatpush.bf16.xpose.msra.mxu0 0
    %356 = vmatpush.bf16.xpose.msra.mxu0 0
    %357 = vmatpush.bf16.xpose.msra.mxu0 0
    %358 = vmatpush.bf16.xpose.msra.mxu0 0
    %359 = vmatpush.bf16.xpose.msra.mxu0 %v350
    %360 = vmatmul.bf16.gmra.mxu0 %v347
    %v361 = vpop.f32.mrf.mxu0
    %v362 = vadd.f32 0.0, %v361
    %v363 = vpop.f32.mrf.mxu0
    %364 = vdwg.mxu0
    %v366 = vunpack.c.l.b16 %v218
    %v367 = vpack.c.b16 %v366, %v366
    %368 = vrot.lane.b32.xlu0 %v367, 96
    %v369 = vpop.permute.xlu0 %368
    %v371 = vsel %vm225, %v218, 0
    %v374 = vsel %vm225, %v369, 0
    %376 = vmatpush.bf16.xpose.msra.mxu0 0
    %377 = vmatpush.bf16.xpose.msra.mxu0 0
    %378 = vmatpush.bf16.xpose.msra.mxu0 0
    %379 = vmatpush.bf16.xpose.msra.mxu0 0
    %380 = vmatpush.bf16.xpose.msra.mxu0 0
    %381 = vmatpush.bf16.xpose.msra.mxu0 0
    %382 = vmatpush.bf16.xpose.msra.mxu0 0
    %383 = vmatpush.bf16.xpose.msra.mxu0 %v374
    %384 = vmatmul.bf16.gmra.mxu0 %v371
    %v385 = vpop.f32.mrf.mxu0
    %v386 = vadd.f32 0.0, %v385
    %v387 = vpop.f32.mrf.mxu0
    %388 = vdwg.mxu0
    %v390 = vunpack.c.l.b16 %v219
    %v391 = vpack.c.b16 %v390, %v390
    %392 = vrot.lane.b32.xlu0 %v391, 96
    %v393 = vpop.permute.xlu0 %392
    %v395 = vsel %vm225, %v219, 0
    %v398 = vsel %vm225, %v393, 0
    %400 = vmatpush.bf16.xpose.msra.mxu0 0
    %401 = vmatpush.bf16.xpose.msra.mxu0 0
    %402 = vmatpush.bf16.xpose.msra.mxu0 0
    %403 = vmatpush.bf16.xpose.msra.mxu0 0
    %404 = vmatpush.bf16.xpose.msra.mxu0 0
    %405 = vmatpush.bf16.xpose.msra.mxu0 0
    %406 = vmatpush.bf16.xpose.msra.mxu0 0
    %407 = vmatpush.bf16.xpose.msra.mxu0 %v398
    %408 = vmatmul.bf16.gmra.mxu0 %v395
    %v409 = vpop.f32.mrf.mxu0
    %v410 = vadd.f32 0.0, %v409
    %v411 = vpop.f32.mrf.mxu0
    %412 = vdwg.mxu0
    %v413 = vsel %vm225, %v242, -inf
    %414 = vmax.xlane.f32.xlu0 %v413
    %v415 = vpop.xlane.xlu0 %414
    %v416 = vsel %vm225, %v266, -inf
    %417 = vmax.xlane.f32.xlu0 %v416
    %v418 = vpop.xlane.xlu0 %417
    %v419 = vsel %vm225, %v290, -inf
    %420 = vmax.xlane.f32.xlu0 %v419
    %v421 = vpop.xlane.xlu0 %420
    %v422 = vsel %vm225, %v314, -inf
    %423 = vmax.xlane.f32.xlu0 %v422
    %v424 = vpop.xlane.xlu0 %423
    %v425 = vsel %vm225, %v338, -inf
    %426 = vmax.xlane.f32.xlu0 %v425
    %v427 = vpop.xlane.xlu0 %426
    %v428 = vsel %vm225, %v362, -inf
    %429 = vmax.xlane.f32.xlu0 %v428
    %v430 = vpop.xlane.xlu0 %429
    %v431 = vsel %vm225, %v386, -inf
    %432 = vmax.xlane.f32.xlu0 %v431
    %v433 = vpop.xlane.xlu0 %432
    %v434 = vsel %vm225, %v410, -inf
    %435 = vmax.xlane.f32.xlu0 %v434
    %v436 = vpop.xlane.xlu0 %435
    %v437 = vsub.f32 %v242, %v415
    %v438 = vsub.f32 %v266, %v418
    %v439 = vsub.f32 %v290, %v421
    %v440 = vsub.f32 %v314, %v424
    %v441 = vsub.f32 %v338, %v427
    %v442 = vsub.f32 %v362, %v430
    %v443 = vsub.f32 %v386, %v433
    %v444 = vsub.f32 %v410, %v436
    %v445 = vmul.f32 %v437, 1.442695
    %v446 = vpow.pop %v445
    %v447 = vmul.f32 %v438, 1.442695
    %v448 = vpow.pop %v447
    %v449 = vmul.f32 %v439, 1.442695
    %v450 = vpow.pop %v449
    %v451 = vmul.f32 %v440, 1.442695
    %v452 = vpow.pop %v451
    %v453 = vmul.f32 %v441, 1.442695
    %v454 = vpow.pop %v453
    %v455 = vmul.f32 %v442, 1.442695
    %v456 = vpow.pop %v455
    %v457 = vmul.f32 %v443, 1.442695
    %v458 = vpow.pop %v457
    %v459 = vmul.f32 %v444, 1.442695
    %v460 = vpow.pop %v459
    %v461 = vsel %vm225, %v446, 0.0
    %462 = vadd.xlane.f32.xlu0 %v461
    %v463 = vpop.xlane.xlu0 %462
    %v464 = vsel %vm225, %v448, 0.0
    %465 = vadd.xlane.f32.xlu0 %v464
    %v466 = vpop.xlane.xlu0 %465
    %v467 = vsel %vm225, %v450, 0.0
    %468 = vadd.xlane.f32.xlu0 %v467
    %v469 = vpop.xlane.xlu0 %468
    %v470 = vsel %vm225, %v452, 0.0
    %471 = vadd.xlane.f32.xlu0 %v470
    %v472 = vpop.xlane.xlu0 %471
    %v473 = vsel %vm225, %v454, 0.0
    %474 = vadd.xlane.f32.xlu0 %v473
    %v475 = vpop.xlane.xlu0 %474
    %v476 = vsel %vm225, %v456, 0.0
    %477 = vadd.xlane.f32.xlu0 %v476
    %v478 = vpop.xlane.xlu0 %477
    %v479 = vsel %vm225, %v458, 0.0
    %480 = vadd.xlane.f32.xlu0 %v479
    %v481 = vpop.xlane.xlu0 %480
    %v482 = vsel %vm225, %v460, 0.0
    %483 = vadd.xlane.f32.xlu0 %v482
    %v484 = vpop.xlane.xlu0 %483
    %v485 = vrcp.pop %v463
    %v486 = vrcp.pop %v466
    %v487 = vrcp.pop %v469
    %v488 = vrcp.pop %v472
    %v489 = vrcp.pop %v475
    %v490 = vrcp.pop %v478
    %v491 = vrcp.pop %v481
    %v492 = vrcp.pop %v484
    %v493 = vmul.f32 %v446, %v485
    %v494 = vmul.f32 %v448, %v486
    %v495 = vmul.f32 %v450, %v487
    %v496 = vmul.f32 %v452, %v488
    %v497 = vmul.f32 %v454, %v489
    %v498 = vmul.f32 %v456, %v490
    %v499 = vmul.f32 %v458, %v491
    %v500 = vmul.f32 %v460, %v492
    %v501 = vpack.c.bf16 %v493, %v493
    %v502 = vpack.c.bf16 %v494, %v494
    %v503 = vpack.c.bf16 %v495, %v495
    %v504 = vpack.c.bf16 %v496, %v496
    %v505 = vpack.c.bf16 %v497, %v497
    %v506 = vpack.c.bf16 %v498, %v498
    %v507 = vpack.c.bf16 %v499, %v499
    %v508 = vpack.c.bf16 %v500, %v500
    %509 = vrot.lane.b32.xlu0 %v222, 64
    %v510 = vpop.permute.xlu0 %509
    %v512 = vsel %vm225, %v501, 0
    %vm514 = vcmask 1043456
    %v516 = vsel %vm514, %v510, 0
    %518 = vmatpush.bf16.msra.mxu0 0
    %519 = vmatpush.bf16.msra.mxu0 0
    %520 = vmatpush.bf16.msra.mxu0 0
    %521 = vmatpush.bf16.msra.mxu0 0
    %522 = vmatpush.bf16.msra.mxu0 0
    %523 = vmatpush.bf16.msra.mxu0 0
    %524 = vmatpush.bf16.msra.mxu0 0
    %525 = vmatpush.bf16.msra.mxu0 %v516
    %526 = vmatmul.bf16.gmra.mxu0 %v512
    %v527 = vpop.f32.mrf.mxu0
    %v528 = vadd.f32 0.0, %v527
    %v529 = vpop.f32.mrf.mxu0
    %530 = vdwg.mxu0
    %531 = vrot.lane.b32.xlu0 %v247, 64
    %v532 = vpop.permute.xlu0 %531
    %v534 = vsel %vm225, %v502, 0
    %v537 = vsel %vm514, %v532, 0
    %539 = vmatpush.bf16.msra.mxu0 0
    %540 = vmatpush.bf16.msra.mxu0 0
    %541 = vmatpush.bf16.msra.mxu0 0
    %542 = vmatpush.bf16.msra.mxu0 0
    %543 = vmatpush.bf16.msra.mxu0 0
    %544 = vmatpush.bf16.msra.mxu0 0
    %545 = vmatpush.bf16.msra.mxu0 0
    %546 = vmatpush.bf16.msra.mxu0 %v537
    %547 = vmatmul.bf16.gmra.mxu0 %v534
    %v548 = vpop.f32.mrf.mxu0
    %v549 = vadd.f32 0.0, %v548
    %v550 = vpop.f32.mrf.mxu0
    %551 = vdwg.mxu0
    %552 = vrot.lane.b32.xlu0 %v271, 64
    %v553 = vpop.permute.xlu0 %552
    %v555 = vsel %vm225, %v503, 0
    %v558 = vsel %vm514, %v553, 0
    %560 = vmatpush.bf16.msra.mxu0 0
    %561 = vmatpush.bf16.msra.mxu0 0
    %562 = vmatpush.bf16.msra.mxu0 0
    %563 = vmatpush.bf16.msra.mxu0 0
    %564 = vmatpush.bf16.msra.mxu0 0
    %565 = vmatpush.bf16.msra.mxu0 0
    %566 = vmatpush.bf16.msra.mxu0 0
    %567 = vmatpush.bf16.msra.mxu0 %v558
    %568 = vmatmul.bf16.gmra.mxu0 %v555
    %v569 = vpop.f32.mrf.mxu0
    %v570 = vadd.f32 0.0, %v569
    %v571 = vpop.f32.mrf.mxu0
    %572 = vdwg.mxu0
    %573 = vrot.lane.b32.xlu0 %v295, 64
    %v574 = vpop.permute.xlu0 %573
    %v576 = vsel %vm225, %v504, 0
    %v579 = vsel %vm514, %v574, 0
    %581 = vmatpush.bf16.msra.mxu0 0
    %582 = vmatpush.bf16.msra.mxu0 0
    %583 = vmatpush.bf16.msra.mxu0 0
    %584 = vmatpush.bf16.msra.mxu0 0
    %585 = vmatpush.bf16.msra.mxu0 0
    %586 = vmatpush.bf16.msra.mxu0 0
    %587 = vmatpush.bf16.msra.mxu0 0
    %588 = vmatpush.bf16.msra.mxu0 %v579
    %589 = vmatmul.bf16.gmra.mxu0 %v576
    %v590 = vpop.f32.mrf.mxu0
    %v591 = vadd.f32 0.0, %v590
    %v592 = vpop.f32.mrf.mxu0
    %593 = vdwg.mxu0
    %594 = vrot.lane.b32.xlu0 %v319, 64
    %v595 = vpop.permute.xlu0 %594
    %v597 = vsel %vm225, %v505, 0
    %v600 = vsel %vm514, %v595, 0
    %602 = vmatpush.bf16.msra.mxu0 0
    %603 = vmatpush.bf16.msra.mxu0 0
    %604 = vmatpush.bf16.msra.mxu0 0
    %605 = vmatpush.bf16.msra.mxu0 0
    %606 = vmatpush.bf16.msra.mxu0 0
    %607 = vmatpush.bf16.msra.mxu0 0
    %608 = vmatpush.bf16.msra.mxu0 0
    %609 = vmatpush.bf16.msra.mxu0 %v600
    %610 = vmatmul.bf16.gmra.mxu0 %v597
    %v611 = vpop.f32.mrf.mxu0
    %v612 = vadd.f32 0.0, %v611
    %v613 = vpop.f32.mrf.mxu0
    %614 = vdwg.mxu0
    %615 = vrot.lane.b32.xlu0 %v343, 64
    %v616 = vpop.permute.xlu0 %615
    %v618 = vsel %vm225, %v506, 0
    %v621 = vsel %vm514, %v616, 0
    %623 = vmatpush.bf16.msra.mxu0 0
    %624 = vmatpush.bf16.msra.mxu0 0
    %625 = vmatpush.bf16.msra.mxu0 0
    %626 = vmatpush.bf16.msra.mxu0 0
    %627 = vmatpush.bf16.msra.mxu0 0
    %628 = vmatpush.bf16.msra.mxu0 0
    %629 = vmatpush.bf16.msra.mxu0 0
    %630 = vmatpush.bf16.msra.mxu0 %v621
    %631 = vmatmul.bf16.gmra.mxu0 %v618
    %v632 = vpop.f32.mrf.mxu0
    %v633 = vadd.f32 0.0, %v632
    %v634 = vpop.f32.mrf.mxu0
    %635 = vdwg.mxu0
    %636 = vrot.lane.b32.xlu0 %v367, 64
    %v637 = vpop.permute.xlu0 %636
    %v639 = vsel %vm225, %v507, 0
    %v642 = vsel %vm514, %v637, 0
    %644 = vmatpush.bf16.msra.mxu0 0
    %645 = vmatpush.bf16.msra.mxu0 0
    %646 = vmatpush.bf16.msra.mxu0 0
    %647 = vmatpush.bf16.msra.mxu0 0
    %648 = vmatpush.bf16.msra.mxu0 0
    %649 = vmatpush.bf16.msra.mxu0 0
    %650 = vmatpush.bf16.msra.mxu0 0
    %651 = vmatpush.bf16.msra.mxu0 %v642
    %652 = vmatmul.bf16.gmra.mxu0 %v639
    %v653 = vpop.f32.mrf.mxu0
    %v654 = vadd.f32 0.0, %v653
    %v655 = vpop.f32.mrf.mxu0
    %656 = vdwg.mxu0
    %657 = vrot.lane.b32.xlu0 %v391, 64
    %v658 = vpop.permute.xlu0 %657
    %v660 = vsel %vm225, %v508, 0
    %v663 = vsel %vm514, %v658, 0
    %665 = vmatpush.bf16.msra.mxu0 0
    %666 = vmatpush.bf16.msra.mxu0 0
    %667 = vmatpush.bf16.msra.mxu0 0
    %668 = vmatpush.bf16.msra.mxu0 0
    %669 = vmatpush.bf16.msra.mxu0 0
    %670 = vmatpush.bf16.msra.mxu0 0
    %671 = vmatpush.bf16.msra.mxu0 0
    %672 = vmatpush.bf16.msra.mxu0 %v663
    %673 = vmatmul.bf16.gmra.mxu0 %v660
    %v674 = vpop.f32.mrf.mxu0
    %v675 = vadd.f32 0.0, %v674
    %v676 = vpop.f32.mrf.mxu0
    %677 = vdwg.mxu0
    %v678 = vld [vmem:[%s6] sm:$0xf]
    %v679 = vld [vmem:[%s6 + $0x4] sm:$0xf]
    %v680 = vld [vmem:[%s6 + $0x8] sm:$0xf]
    %v681 = vld [vmem:[%s6 + $0xc] sm:$0xf]
    %v682 = vpack.c.bf16 %v528, %v528
    %v683 = vpack.c.bf16 %v549, %v549
    %v684 = vpack.c.bf16 %v570, %v570
    %v685 = vpack.c.bf16 %v591, %v591
    %v686 = vpack.c.bf16 %v612, %v612
    %v687 = vpack.c.bf16 %v633, %v633
    %v688 = vpack.c.bf16 %v654, %v654
    %v689 = vpack.c.bf16 %v675, %v675
    %v691 = vsel %vm225, %v682, 0
    %v694 = vsel %vm514, %v678, 0
    %696 = vmatpush.bf16.msra.mxu0 0
    %697 = vmatpush.bf16.msra.mxu0 0
    %698 = vmatpush.bf16.msra.mxu0 0
    %699 = vmatpush.bf16.msra.mxu0 0
    %700 = vmatpush.bf16.msra.mxu0 0
    %701 = vmatpush.bf16.msra.mxu0 0
    %702 = vmatpush.bf16.msra.mxu0 0
    %703 = vmatpush.bf16.msra.mxu0 %v694
    %704 = vmatmul.bf16.gmra.mxu0 %v691
    %v705 = vpop.f32.mrf.mxu0
    %v706 = vadd.f32 0.0, %v705
    %v707 = vpop.f32.mrf.mxu0
    %708 = vdwg.mxu0
    %v710 = vsel %vm225, %v683, 0
    %712 = vmatpush.bf16.msra.mxu0 0
    %713 = vmatpush.bf16.msra.mxu0 0
    %714 = vmatpush.bf16.msra.mxu0 0
    %715 = vmatpush.bf16.msra.mxu0 0
    %716 = vmatpush.bf16.msra.mxu0 0
    %717 = vmatpush.bf16.msra.mxu0 0
    %718 = vmatpush.bf16.msra.mxu0 0
    %719 = vmatpush.bf16.msra.mxu0 %v694
    %720 = vmatmul.bf16.gmra.mxu0 %v710
    %v721 = vpop.f32.mrf.mxu0
    %v722 = vadd.f32 0.0, %v721
    %v723 = vpop.f32.mrf.mxu0
    %724 = vdwg.mxu0
    %v726 = vsel %vm225, %v684, 0
    %v729 = vsel %vm514, %v679, 0
    %731 = vmatpush.bf16.msra.mxu0 0
    %732 = vmatpush.bf16.msra.mxu0 0
    %733 = vmatpush.bf16.msra.mxu0 0
    %734 = vmatpush.bf16.msra.mxu0 0
    %735 = vmatpush.bf16.msra.mxu0 0
    %736 = vmatpush.bf16.msra.mxu0 0
    %737 = vmatpush.bf16.msra.mxu0 0
    %738 = vmatpush.bf16.msra.mxu0 %v729
    %739 = vmatmul.bf16.gmra.mxu0 %v726
    %v740 = vpop.f32.mrf.mxu0
    %v741 = vadd.f32 0.0, %v740
    %v742 = vpop.f32.mrf.mxu0
    %743 = vdwg.mxu0
    %v745 = vsel %vm225, %v685, 0
    %747 = vmatpush.bf16.msra.mxu0 0
    %748 = vmatpush.bf16.msra.mxu0 0
    %749 = vmatpush.bf16.msra.mxu0 0
    %750 = vmatpush.bf16.msra.mxu0 0
    %751 = vmatpush.bf16.msra.mxu0 0
    %752 = vmatpush.bf16.msra.mxu0 0
    %753 = vmatpush.bf16.msra.mxu0 0
    %754 = vmatpush.bf16.msra.mxu0 %v729
    %755 = vmatmul.bf16.gmra.mxu0 %v745
    %v756 = vpop.f32.mrf.mxu0
    %v757 = vadd.f32 0.0, %v756
    %v758 = vpop.f32.mrf.mxu0
    %759 = vdwg.mxu0
    %v761 = vsel %vm225, %v686, 0
    %v764 = vsel %vm514, %v680, 0
    %766 = vmatpush.bf16.msra.mxu0 0
    %767 = vmatpush.bf16.msra.mxu0 0
    %768 = vmatpush.bf16.msra.mxu0 0
    %769 = vmatpush.bf16.msra.mxu0 0
    %770 = vmatpush.bf16.msra.mxu0 0
    %771 = vmatpush.bf16.msra.mxu0 0
    %772 = vmatpush.bf16.msra.mxu0 0
    %773 = vmatpush.bf16.msra.mxu0 %v764
    %774 = vmatmul.bf16.gmra.mxu0 %v761
    %v775 = vpop.f32.mrf.mxu0
    %v776 = vadd.f32 0.0, %v775
    %v777 = vpop.f32.mrf.mxu0
    %778 = vdwg.mxu0
    %v780 = vsel %vm225, %v687, 0
    %782 = vmatpush.bf16.msra.mxu0 0
    %783 = vmatpush.bf16.msra.mxu0 0
    %784 = vmatpush.bf16.msra.mxu0 0
    %785 = vmatpush.bf16.msra.mxu0 0
    %786 = vmatpush.bf16.msra.mxu0 0
    %787 = vmatpush.bf16.msra.mxu0 0
    %788 = vmatpush.bf16.msra.mxu0 0
    %789 = vmatpush.bf16.msra.mxu0 %v764
    %790 = vmatmul.bf16.gmra.mxu0 %v780
    %v791 = vpop.f32.mrf.mxu0
    %v792 = vadd.f32 0.0, %v791
    %v793 = vpop.f32.mrf.mxu0
    %794 = vdwg.mxu0
    %v796 = vsel %vm225, %v688, 0
    %v799 = vsel %vm514, %v681, 0
    %801 = vmatpush.bf16.msra.mxu0 0
    %802 = vmatpush.bf16.msra.mxu0 0
    %803 = vmatpush.bf16.msra.mxu0 0
    %804 = vmatpush.bf16.msra.mxu0 0
    %805 = vmatpush.bf16.msra.mxu0 0
    %806 = vmatpush.bf16.msra.mxu0 0
    %807 = vmatpush.bf16.msra.mxu0 0
    %808 = vmatpush.bf16.msra.mxu0 %v799
    %809 = vmatmul.bf16.gmra.mxu0 %v796
    %v810 = vpop.f32.mrf.mxu0
    %v811 = vadd.f32 0.0, %v810
    %v812 = vpop.f32.mrf.mxu0
    %813 = vdwg.mxu0
    %v815 = vsel %vm225, %v689, 0
    %817 = vmatpush.bf16.msra.mxu0 0
    %818 = vmatpush.bf16.msra.mxu0 0
    %819 = vmatpush.bf16.msra.mxu0 0
    %820 = vmatpush.bf16.msra.mxu0 0
    %821 = vmatpush.bf16.msra.mxu0 0
    %822 = vmatpush.bf16.msra.mxu0 0
    %823 = vmatpush.bf16.msra.mxu0 0
    %824 = vmatpush.bf16.msra.mxu0 %v799
    %825 = vmatmul.bf16.gmra.mxu0 %v815
    %v826 = vpop.f32.mrf.mxu0
    %v827 = vadd.f32 0.0, %v826
    %v828 = vpop.f32.mrf.mxu0
    %829 = vdwg.mxu0
    %v830 = vsel %vm174, %v706, 0.0
    %v831 = vsel %vm174, %v741, 0.0
    %v832 = vadd.f32 %v830, %v831
    %v833 = vsel %vm174, %v776, 0.0
    %v834 = vadd.f32 %v832, %v833
    %v835 = vsel %vm174, %v811, 0.0
    %v836 = vadd.f32 %v834, %v835
    %v837 = vsel %vm174, %v722, 0.0
    %v838 = vsel %vm174, %v757, 0.0
    %v839 = vadd.f32 %v837, %v838
    %v840 = vsel %vm174, %v792, 0.0
    %v841 = vadd.f32 %v839, %v840
    %v842 = vsel %vm174, %v827, 0.0
    %v843 = vadd.f32 %v841, %v842
    %v844 = vld [vmem:[%s7] sm:$0x1]
    %v846 = vperm.slane %v844, 0
    %v848 = vadd.f32 %v836, %v846
    %v849 = vadd.f32 %v843, %v846
    %v850 = vld [vmem:[%s12] sm:$0xf]
    %v851 = vadd.f32 %v151, %v848
    %v852 = vadd.f32 %v152, %v849
    %v853 = vsel %vm174, %v851, 0.0
    %854 = vadd.xlane.f32.xlu0 %v853
    %v855 = vpop.xlane.xlu0 %854
    %v856 = vsel %vm174, %v852, 0.0
    %857 = vadd.xlane.f32.xlu0 %v856
    %v858 = vpop.xlane.xlu0 %857
    %v859 = vrcp.pop 32.0
    %v860 = vmul.f32 32.0, %v859
    %v861 = vsub.f32 1.0, %v860
    %v862 = vmul.f32 %v859, %v861
    %v863 = vadd.f32 %v859, %v862
    %vm864 = vweird.f32 %v859
    %v865 = vsel %vm864, %v859, %v863
    %v866 = vmul.f32 %v855, %v865
    %v867 = vmul.f32 %v858, %v865
    %v868 = vsub.f32 %v851, %v866
    %v869 = vsub.f32 %v852, %v867
    %v870 = vmul.f32 %v868, %v868
    %v871 = vmul.f32 %v869, %v869
    %v872 = vsel %vm174, %v870, 0.0
    %873 = vadd.xlane.f32.xlu0 %v872
    %v874 = vpop.xlane.xlu0 %873
    %v875 = vsel %vm174, %v871, 0.0
    %876 = vadd.xlane.f32.xlu0 %v875
    %v877 = vpop.xlane.xlu0 %876
    %v878 = vmul.f32 %v874, %v865
    %v879 = vmul.f32 %v877, %v865
    %v880 = vadd.f32 %v878, 1e-05
    %v881 = vadd.f32 %v879, 1e-05
    %v882 = vrsqrt.pop %v880
    %v883 = vmul.f32 %v882, %v880
    %v884 = vmul.f32 %v883, %v882
    %v885 = vmul.f32 0.5, %v884
    %v886 = vsub.f32 1.5, %v885
    %v887 = vmul.f32 %v882, %v886
    %vm888 = vweird.f32 %v880
    %vm889 = vweird.f32 %v882
    %vm890 = vmor %vm888, %vm889
    %v891 = vsel %vm890, %v882, %v887
    %v892 = vrsqrt.pop %v881
    %v893 = vmul.f32 %v892, %v881
    %v894 = vmul.f32 %v893, %v892
    %v895 = vmul.f32 0.5, %v894
    %v896 = vsub.f32 1.5, %v895
    %v897 = vmul.f32 %v892, %v896
    %vm898 = vweird.f32 %v881
    %vm899 = vweird.f32 %v892
    %vm900 = vmor %vm898, %vm899
    %v901 = vsel %vm900, %v892, %v897
    %v902 = vmul.f32 %v868, %v891
    %v903 = vmul.f32 %v869, %v901
    %v904 = vperm.slane %v850, 0
    %v905 = vmul.f32 %v902, %v904
    %v906 = vmul.f32 %v903, %v904
    %v907 = vperm.slane %v850, 1
    %v908 = vadd.f32 %v905, %v907
    %v909 = vadd.f32 %v906, %v907
    %v910 = vpack.c.bf16 %v909, %v908
    %v911 = vld [vmem:[%s8] sm:$0xf]
    %v912 = vld [vmem:[%s8 + $0x4] sm:$0xf]
    %v913 = vld [vmem:[%s8 + $0x8] sm:$0xf]
    %v914 = vld [vmem:[%s8 + $0xc] sm:$0xf]
    %v915 = vld [vmem:[%s9] sm:$0x1]
    %v917 = vperm.slane %v915, 0
    %v923 = vunpack.c.l.b16 %v911
    %v924 = vunpack.c.l.b16 %v912
    %v925 = vunpack.c.l.b16 %v913
    %v926 = vunpack.c.l.b16 %v914
    %v927 = vpack.c.b16 %v924, %v923
    %v928 = vpack.c.b16 %v926, %v925
    %v932 = vsel %vm174, %v910, 0
    %934 = vmatpush.bf16.msra.mxu0 0
    %935 = vmatpush.bf16.msra.mxu0 0
    %936 = vmatpush.bf16.msra.mxu0 0
    %937 = vmatpush.bf16.msra.mxu0 0
    %938 = vmatpush.bf16.msra.mxu0 0
    %939 = vmatpush.bf16.msra.mxu0 0
    %940 = vmatpush.bf16.msra.mxu0 %v928
    %941 = vmatpush.bf16.msra.mxu0 %v927
    %942 = vmatmul.bf16.gmra.mxu0 %v932
    %v943 = vpop.f32.mrf.mxu0
    %v944 = vadd.f32 %v917, %v943
    %v945 = vpop.f32.mrf.mxu0
    %v946 = vadd.f32 %v917, %v945
    %947 = vdwg.mxu0
    %v948 = vmax.f32 %v944, 0.0
    %v949 = vmax.f32 %v946, 0.0
    %v950 = vpack.c.bf16 %v949, %v948
    %v951 = vld [vmem:[%s10] sm:$0xf]
    %v952 = vld [vmem:[%s10 + $0x4] sm:$0xf]
    %v953 = vld [vmem:[%s10 + $0x8] sm:$0xf]
    %v954 = vld [vmem:[%s10 + $0xc] sm:$0xf]
    %v955 = vld [vmem:[%s10 + $0x10] sm:$0xf]
    %v956 = vld [vmem:[%s10 + $0x14] sm:$0xf]
    %v957 = vld [vmem:[%s10 + $0x18] sm:$0xf]
    %v958 = vld [vmem:[%s10 + $0x1c] sm:$0xf]
    %v959 = vld [vmem:[%s11] sm:$0x1]
    %v961 = vperm.slane %v959, 0
    %v971 = vunpack.c.l.b16 %v951
    %v972 = vunpack.c.l.b16 %v952
    %v973 = vunpack.c.l.b16 %v953
    %v974 = vunpack.c.l.b16 %v954
    %v975 = vunpack.c.l.b16 %v955
    %v976 = vunpack.c.l.b16 %v956
    %v977 = vunpack.c.l.b16 %v957
    %v978 = vunpack.c.l.b16 %v958
    %v979 = vpack.c.b16 %v972, %v971
    %v980 = vpack.c.b16 %v974, %v973
    %v981 = vpack.c.b16 %v976, %v975
    %v982 = vpack.c.b16 %v978, %v977
    %vm987 = vcmask 523264
    %v989 = vsel %vm987, %v950, 0
    %991 = vmatpush.bf16.msra.mxu0 0
    %992 = vmatpush.bf16.msra.mxu0 0
    %993 = vmatpush.bf16.msra.mxu0 0
    %994 = vmatpush.bf16.msra.mxu0 0
    %995 = vmatpush.bf16.msra.mxu0 %v982
    %996 = vmatpush.bf16.msra.mxu0 %v981
    %997 = vmatpush.bf16.msra.mxu0 %v980
    %998 = vmatpush.bf16.msra.mxu0 %v979
    %999 = vmatmul.bf16.gmra.mxu0 %v989
    %v1000 = vpop.f32.mrf.mxu0
    %v1001 = vadd.f32 %v961, %v1000
    %v1002 = vpop.f32.mrf.mxu0
    %v1003 = vadd.f32 %v961, %v1002
    %1004 = vdwg.mxu0
    %v1005 = vadd.f32 %v908, %v1001
    %v1006 = vadd.f32 %v909, %v1003
    %v1007 = vsel %vm174, %v1005, 0.0
    %1008 = vadd.xlane.f32.xlu0 %v1007
    %v1009 = vpop.xlane.xlu0 %1008
    %v1010 = vsel %vm174, %v1006, 0.0
    %1011 = vadd.xlane.f32.xlu0 %v1010
    %v1012 = vpop.xlane.xlu0 %1011
    %v1013 = vmul.f32 %v1009, %v865
    %v1014 = vmul.f32 %v1012, %v865
    %v1015 = vsub.f32 %v1005, %v1013
    %v1016 = vsub.f32 %v1006, %v1014
    %v1017 = vmul.f32 %v1015, %v1015
    %v1018 = vmul.f32 %v1016, %v1016
    %v1019 = vsel %vm174, %v1017, 0.0
    %1020 = vadd.xlane.f32.xlu0 %v1019
    %v1021 = vpop.xlane.xlu0 %1020
    %v1022 = vsel %vm174, %v1018, 0.0
    %1023 = vadd.xlane.f32.xlu0 %v1022
    %v1024 = vpop.xlane.xlu0 %1023
    %v1025 = vmul.f32 %v1021, %v865
    %v1026 = vmul.f32 %v1024, %v865
    %v1027 = vadd.f32 %v1025, 1e-05
    %v1028 = vadd.f32 %v1026, 1e-05
    %v1029 = vrsqrt.pop %v1027
    %v1030 = vmul.f32 %v1029, %v1027
    %v1031 = vmul.f32 %v1030, %v1029
    %v1032 = vmul.f32 0.5, %v1031
    %v1033 = vsub.f32 1.5, %v1032
    %v1034 = vmul.f32 %v1029, %v1033
    %vm1035 = vweird.f32 %v1027
    %vm1036 = vweird.f32 %v1029
    %vm1037 = vmor %vm1035, %vm1036
    %v1038 = vsel %vm1037, %v1029, %v1034
    %v1039 = vrsqrt.pop %v1028
    %v1040 = vmul.f32 %v1039, %v1028
    %v1041 = vmul.f32 %v1040, %v1039
    %v1042 = vmul.f32 0.5, %v1041
    %v1043 = vsub.f32 1.5, %v1042
    %v1044 = vmul.f32 %v1039, %v1043
    %vm1045 = vweird.f32 %v1028
    %vm1046 = vweird.f32 %v1039
    %vm1047 = vmor %vm1045, %vm1046
    %v1048 = vsel %vm1047, %v1039, %v1044
    %v1049 = vmul.f32 %v1015, %v1038
    %v1050 = vmul.f32 %v1016, %v1048
    %v1051 = vperm.slane %v850, 2
    %v1052 = vmul.f32 %v1049, %v1051
    %v1053 = vmul.f32 %v1050, %v1051
    %v1054 = vperm.slane %v850, 3
    %v1055 = vadd.f32 %v1052, %v1054
    %v1056 = vadd.f32 %v1053, %v1054
    %v1057 = vpack.c.bf16 %v1056, %v1055
    %s1058 = scalar_lea.vmem %s4, 16
    %v1059 = vld [vmem:[%s1058] sm:$0xf]
    %v1060 = vld [vmem:[%s1058 + $0x4] sm:$0xf]
    %v1061 = vld [vmem:[%s1058 + $0x8] sm:$0xf]
    %v1062 = vld [vmem:[%s1058 + $0xc] sm:$0xf]
    %s1063 = scalar_lea.vmem [#allocation5], 1
    %v1064 = vld [vmem:[%s1063] sm:$0x1]
    %v1066 = vperm.slane %v1064, 0
    %v1072 = vunpack.c.l.b16 %v1059
    %v1073 = vunpack.c.l.b16 %v1060
    %v1074 = vunpack.c.l.b16 %v1061
    %v1075 = vunpack.c.l.b16 %v1062
    %v1076 = vpack.c.b16 %v1073, %v1072
    %v1077 = vpack.c.b16 %v1075, %v1074
    %v1081 = vsel %vm174, %v1057, 0
    %1083 = vmatpush.bf16.msra.mxu0 0
    %1084 = vmatpush.bf16.msra.mxu0 0
    %1085 = vmatpush.bf16.msra.mxu0 0
    %1086 = vmatpush.bf16.msra.mxu0 0
    %1087 = vmatpush.bf16.msra.mxu0 0
    %1088 = vmatpush.bf16.msra.mxu0 0
    %1089 = vmatpush.bf16.msra.mxu0 %v1077
    %1090 = vmatpush.bf16.msra.mxu0 %v1076
    %1091 = vmatmul.bf16.gmra.mxu0 %v1081
    %v1092 = vpop.f32.mrf.mxu0
    %v1093 = vadd.f32 %v1066, %v1092
    %v1094 = vpop.f32.mrf.mxu0
    %v1095 = vadd.f32 %v1066, %v1094
    %1096 = vdwg.mxu0
    %1099 = vrot.lane.b32.xlu0 %v1093, 120
    %v1100 = vpop.permute.xlu0 %1099
    %1101 = vrot.lane.b32.xlu0 %v1095, 120
    %v1102 = vpop.permute.xlu0 %1101
    %1105 = vrot.lane.b32.xlu0 %v1093, 112
    %v1106 = vpop.permute.xlu0 %1105
    %1107 = vrot.lane.b32.xlu0 %v1095, 112
    %v1108 = vpop.permute.xlu0 %1107
    %1111 = vrot.lane.b32.xlu0 %v1093, 104
    %v1112 = vpop.permute.xlu0 %1111
    %1113 = vrot.lane.b32.xlu0 %v1095, 104
    %v1114 = vpop.permute.xlu0 %1113
    %v1117 = vpack.c.bf16 %v1093, %v1093
    %v1118 = vpack.c.bf16 %v1095, %v1095
    %v1119 = vpack.c.bf16 %v1100, %v1100
    %v1120 = vpack.c.bf16 %v1102, %v1102
    %v1121 = vpack.c.bf16 %v1106, %v1106
    %v1122 = vpack.c.bf16 %v1108, %v1108
    %v1123 = vpack.c.bf16 %v1112, %v1112
    %v1124 = vpack.c.bf16 %v1114, %v1114
    %v1126 = vunpack.c.l.b16 %v1117
    %v1127 = vpack.c.b16 %v1126, %v1126
    %1128 = vrot.lane.b32.xlu0 %v1127, 96
    %v1129 = vpop.permute.xlu0 %1128
    %v1131 = vsel %vm225, %v1117, 0
    %v1134 = vsel %vm225, %v1129, 0
    %1136 = vmatpush.bf16.xpose.msra.mxu0 0
    %1137 = vmatpush.bf16.xpose.msra.mxu0 0
    %1138 = vmatpush.bf16.xpose.msra.mxu0 0
    %1139 = vmatpush.bf16.xpose.msra.mxu0 0
    %1140 = vmatpush.bf16.xpose.msra.mxu0 0
    %1141 = vmatpush.bf16.xpose.msra.mxu0 0
    %1142 = vmatpush.bf16.xpose.msra.mxu0 0
    %1143 = vmatpush.bf16.xpose.msra.mxu0 %v1134
    %1144 = vmatmul.bf16.gmra.mxu0 %v1131
    %v1145 = vpop.f32.mrf.mxu0
    %v1146 = vadd.f32 0.0, %v1145
    %v1147 = vpop.f32.mrf.mxu0
    %1148 = vdwg.mxu0
    %v1150 = vunpack.c.l.b16 %v1118
    %v1151 = vpack.c.b16 %v1150, %v1150
    %1152 = vrot.lane.b32.xlu0 %v1151, 96
    %v1153 = vpop.permute.xlu0 %1152
    %v1155 = vsel %vm225, %v1118, 0
    %v1158 = vsel %vm225, %v1153, 0
    %1160 = vmatpush.bf16.xpose.msra.mxu0 0
    %1161 = vmatpush.bf16.xpose.msra.mxu0 0
    %1162 = vmatpush.bf16.xpose.msra.mxu0 0
    %1163 = vmatpush.bf16.xpose.msra.mxu0 0
    %1164 = vmatpush.bf16.xpose.msra.mxu0 0
    %1165 = vmatpush.bf16.xpose.msra.mxu0 0
    %1166 = vmatpush.bf16.xpose.msra.mxu0 0
    %1167 = vmatpush.bf16.xpose.msra.mxu0 %v1158
    %1168 = vmatmul.bf16.gmra.mxu0 %v1155
    %v1169 = vpop.f32.mrf.mxu0
    %v1170 = vadd.f32 0.0, %v1169
    %v1171 = vpop.f32.mrf.mxu0
    %1172 = vdwg.mxu0
    %v1174 = vunpack.c.l.b16 %v1119
    %v1175 = vpack.c.b16 %v1174, %v1174
    %1176 = vrot.lane.b32.xlu0 %v1175, 96
    %v1177 = vpop.permute.xlu0 %1176
    %v1179 = vsel %vm225, %v1119, 0
    %v1182 = vsel %vm225, %v1177, 0
    %1184 = vmatpush.bf16.xpose.msra.mxu0 0
    %1185 = vmatpush.bf16.xpose.msra.mxu0 0
    %1186 = vmatpush.bf16.xpose.msra.mxu0 0
    %1187 = vmatpush.bf16.xpose.msra.mxu0 0
    %1188 = vmatpush.bf16.xpose.msra.mxu0 0
    %1189 = vmatpush.bf16.xpose.msra.mxu0 0
    %1190 = vmatpush.bf16.xpose.msra.mxu0 0
    %1191 = vmatpush.bf16.xpose.msra.mxu0 %v1182
    %1192 = vmatmul.bf16.gmra.mxu0 %v1179
    %v1193 = vpop.f32.mrf.mxu0
    %v1194 = vadd.f32 0.0, %v1193
    %v1195 = vpop.f32.mrf.mxu0
    %1196 = vdwg.mxu0
    %v1198 = vunpack.c.l.b16 %v1120
    %v1199 = vpack.c.b16 %v1198, %v1198
    %1200 = vrot.lane.b32.xlu0 %v1199, 96
    %v1201 = vpop.permute.xlu0 %1200
    %v1203 = vsel %vm225, %v1120, 0
    %v1206 = vsel %vm225, %v1201, 0
    %1208 = vmatpush.bf16.xpose.msra.mxu0 0
    %1209 = vmatpush.bf16.xpose.msra.mxu0 0
    %1210 = vmatpush.bf16.xpose.msra.mxu0 0
    %1211 = vmatpush.bf16.xpose.msra.mxu0 0
    %1212 = vmatpush.bf16.xpose.msra.mxu0 0
    %1213 = vmatpush.bf16.xpose.msra.mxu0 0
    %1214 = vmatpush.bf16.xpose.msra.mxu0 0
    %1215 = vmatpush.bf16.xpose.msra.mxu0 %v1206
    %1216 = vmatmul.bf16.gmra.mxu0 %v1203
    %v1217 = vpop.f32.mrf.mxu0
    %v1218 = vadd.f32 0.0, %v1217
    %v1219 = vpop.f32.mrf.mxu0
    %1220 = vdwg.mxu0
    %v1222 = vunpack.c.l.b16 %v1121
    %v1223 = vpack.c.b16 %v1222, %v1222
    %1224 = vrot.lane.b32.xlu0 %v1223, 96
    %v1225 = vpop.permute.xlu0 %1224
    %v1227 = vsel %vm225, %v1121, 0
    %v1230 = vsel %vm225, %v1225, 0
    %1232 = vmatpush.bf16.xpose.msra.mxu0 0
    %1233 = vmatpush.bf16.xpose.msra.mxu0 0
    %1234 = vmatpush.bf16.xpose.msra.mxu0 0
    %1235 = vmatpush.bf16.xpose.msra.mxu0 0
    %1236 = vmatpush.bf16.xpose.msra.mxu0 0
    %1237 = vmatpush.bf16.xpose.msra.mxu0 0
    %1238 = vmatpush.bf16.xpose.msra.mxu0 0
    %1239 = vmatpush.bf16.xpose.msra.mxu0 %v1230
    %1240 = vmatmul.bf16.gmra.mxu0 %v1227
    %v1241 = vpop.f32.mrf.mxu0
    %v1242 = vadd.f32 0.0, %v1241
    %v1243 = vpop.f32.mrf.mxu0
    %1244 = vdwg.mxu0
    %v1246 = vunpack.c.l.b16 %v1122
    %v1247 = vpack.c.b16 %v1246, %v1246
    %1248 = vrot.lane.b32.xlu0 %v1247, 96
    %v1249 = vpop.permute.xlu0 %1248
    %v1251 = vsel %vm225, %v1122, 0
    %v1254 = vsel %vm225, %v1249, 0
    %1256 = vmatpush.bf16.xpose.msra.mxu0 0
    %1257 = vmatpush.bf16.xpose.msra.mxu0 0
    %1258 = vmatpush.bf16.xpose.msra.mxu0 0
    %1259 = vmatpush.bf16.xpose.msra.mxu0 0
    %1260 = vmatpush.bf16.xpose.msra.mxu0 0
    %1261 = vmatpush.bf16.xpose.msra.mxu0 0
    %1262 = vmatpush.bf16.xpose.msra.mxu0 0
    %1263 = vmatpush.bf16.xpose.msra.mxu0 %v1254
    %1264 = vmatmul.bf16.gmra.mxu0 %v1251
    %v1265 = vpop.f32.mrf.mxu0
    %v1266 = vadd.f32 0.0, %v1265
    %v1267 = vpop.f32.mrf.mxu0
    %1268 = vdwg.mxu0
    %v1270 = vunpack.c.l.b16 %v1123
    %v1271 = vpack.c.b16 %v1270, %v1270
    %1272 = vrot.lane.b32.xlu0 %v1271, 96
    %v1273 = vpop.permute.xlu0 %1272
    %v1275 = vsel %vm225, %v1123, 0
    %v1278 = vsel %vm225, %v1273, 0
    %1280 = vmatpush.bf16.xpose.msra.mxu0 0
    %1281 = vmatpush.bf16.xpose.msra.mxu0 0
    %1282 = vmatpush.bf16.xpose.msra.mxu0 0
    %1283 = vmatpush.bf16.xpose.msra.mxu0 0
    %1284 = vmatpush.bf16.xpose.msra.mxu0 0
    %1285 = vmatpush.bf16.xpose.msra.mxu0 0
    %1286 = vmatpush.bf16.xpose.msra.mxu0 0
    %1287 = vmatpush.bf16.xpose.msra.mxu0 %v1278
    %1288 = vmatmul.bf16.gmra.mxu0 %v1275
    %v1289 = vpop.f32.mrf.mxu0
    %v1290 = vadd.f32 0.0, %v1289
    %v1291 = vpop.f32.mrf.mxu0
    %1292 = vdwg.mxu0
    %v1294 = vunpack.c.l.b16 %v1124
    %v1295 = vpack.c.b16 %v1294, %v1294
    %1296 = vrot.lane.b32.xlu0 %v1295, 96
    %v1297 = vpop.permute.xlu0 %1296
    %v1299 = vsel %vm225, %v1124, 0
    %v1302 = vsel %vm225, %v1297, 0
    %1304 = vmatpush.bf16.xpose.msra.mxu0 0
    %1305 = vmatpush.bf16.xpose.msra.mxu0 0
    %1306 = vmatpush.bf16.xpose.msra.mxu0 0
    %1307 = vmatpush.bf16.xpose.msra.mxu0 0
    %1308 = vmatpush.bf16.xpose.msra.mxu0 0
    %1309 = vmatpush.bf16.xpose.msra.mxu0 0
    %1310 = vmatpush.bf16.xpose.msra.mxu0 0
    %1311 = vmatpush.bf16.xpose.msra.mxu0 %v1302
    %1312 = vmatmul.bf16.gmra.mxu0 %v1299
    %v1313 = vpop.f32.mrf.mxu0
    %v1314 = vadd.f32 0.0, %v1313
    %v1315 = vpop.f32.mrf.mxu0
    %1316 = vdwg.mxu0
    %v1317 = vsel %vm225, %v1146, -inf
    %1318 = vmax.xlane.f32.xlu0 %v1317
    %v1319 = vpop.xlane.xlu0 %1318
    %v1320 = vsel %vm225, %v1170, -inf
    %1321 = vmax.xlane.f32.xlu0 %v1320
    %v1322 = vpop.xlane.xlu0 %1321
    %v1323 = vsel %vm225, %v1194, -inf
    %1324 = vmax.xlane.f32.xlu0 %v1323
    %v1325 = vpop.xlane.xlu0 %1324
    %v1326 = vsel %vm225, %v1218, -inf
    %1327 = vmax.xlane.f32.xlu0 %v1326
    %v1328 = vpop.xlane.xlu0 %1327
    %v1329 = vsel %vm225, %v1242, -inf
    %1330 = vmax.xlane.f32.xlu0 %v1329
    %v1331 = vpop.xlane.xlu0 %1330
    %v1332 = vsel %vm225, %v1266, -inf
    %1333 = vmax.xlane.f32.xlu0 %v1332
    %v1334 = vpop.xlane.xlu0 %1333
    %v1335 = vsel %vm225, %v1290, -inf
    %1336 = vmax.xlane.f32.xlu0 %v1335
    %v1337 = vpop.xlane.xlu0 %1336
    %v1338 = vsel %vm225, %v1314, -inf
    %1339 = vmax.xlane.f32.xlu0 %v1338
    %v1340 = vpop.xlane.xlu0 %1339
    %v1341 = vsub.f32 %v1146, %v1319
    %v1342 = vsub.f32 %v1170, %v1322
    %v1343 = vsub.f32 %v1194, %v1325
    %v1344 = vsub.f32 %v1218, %v1328
    %v1345 = vsub.f32 %v1242, %v1331
    %v1346 = vsub.f32 %v1266, %v1334
    %v1347 = vsub.f32 %v1290, %v1337
    %v1348 = vsub.f32 %v1314, %v1340
    %v1349 = vmul.f32 %v1341, 1.442695
    %v1350 = vpow.pop %v1349
    %v1351 = vmul.f32 %v1342, 1.442695
    %v1352 = vpow.pop %v1351
    %v1353 = vmul.f32 %v1343, 1.442695
    %v1354 = vpow.pop %v1353
    %v1355 = vmul.f32 %v1344, 1.442695
    %v1356 = vpow.pop %v1355
    %v1357 = vmul.f32 %v1345, 1.442695
    %v1358 = vpow.pop %v1357
    %v1359 = vmul.f32 %v1346, 1.442695
    %v1360 = vpow.pop %v1359
    %v1361 = vmul.f32 %v1347, 1.442695
    %v1362 = vpow.pop %v1361
    %v1363 = vmul.f32 %v1348, 1.442695
    %v1364 = vpow.pop %v1363
    %v1365 = vsel %vm225, %v1350, 0.0
    %1366 = vadd.xlane.f32.xlu0 %v1365
    %v1367 = vpop.xlane.xlu0 %1366
    %v1368 = vsel %vm225, %v1352, 0.0
    %1369 = vadd.xlane.f32.xlu0 %v1368
    %v1370 = vpop.xlane.xlu0 %1369
    %v1371 = vsel %vm225, %v1354, 0.0
    %1372 = vadd.xlane.f32.xlu0 %v1371
    %v1373 = vpop.xlane.xlu0 %1372
    %v1374 = vsel %vm225, %v1356, 0.0
    %1375 = vadd.xlane.f32.xlu0 %v1374
    %v1376 = vpop.xlane.xlu0 %1375
    %v1377 = vsel %vm225, %v1358, 0.0
    %1378 = vadd.xlane.f32.xlu0 %v1377
    %v1379 = vpop.xlane.xlu0 %1378
    %v1380 = vsel %vm225, %v1360, 0.0
    %1381 = vadd.xlane.f32.xlu0 %v1380
    %v1382 = vpop.xlane.xlu0 %1381
    %v1383 = vsel %vm225, %v1362, 0.0
    %1384 = vadd.xlane.f32.xlu0 %v1383
    %v1385 = vpop.xlane.xlu0 %1384
    %v1386 = vsel %vm225, %v1364, 0.0
    %1387 = vadd.xlane.f32.xlu0 %v1386
    %v1388 = vpop.xlane.xlu0 %1387
    %v1389 = vrcp.pop %v1367
    %v1390 = vrcp.pop %v1370
    %v1391 = vrcp.pop %v1373
    %v1392 = vrcp.pop %v1376
    %v1393 = vrcp.pop %v1379
    %v1394 = vrcp.pop %v1382
    %v1395 = vrcp.pop %v1385
    %v1396 = vrcp.pop %v1388
    %v1397 = vmul.f32 %v1350, %v1389
    %v1398 = vmul.f32 %v1352, %v1390
    %v1399 = vmul.f32 %v1354, %v1391
    %v1400 = vmul.f32 %v1356, %v1392
    %v1401 = vmul.f32 %v1358, %v1393
    %v1402 = vmul.f32 %v1360, %v1394
    %v1403 = vmul.f32 %v1362, %v1395
    %v1404 = vmul.f32 %v1364, %v1396
    %v1405 = vpack.c.bf16 %v1397, %v1397
    %v1406 = vpack.c.bf16 %v1398, %v1398
    %v1407 = vpack.c.bf16 %v1399, %v1399
    %v1408 = vpack.c.bf16 %v1400, %v1400
    %v1409 = vpack.c.bf16 %v1401, %v1401
    %v1410 = vpack.c.bf16 %v1402, %v1402
    %v1411 = vpack.c.bf16 %v1403, %v1403
    %v1412 = vpack.c.bf16 %v1404, %v1404
    %1413 = vrot.lane.b32.xlu0 %v1127, 64
    %v1414 = vpop.permute.xlu0 %1413
    %v1416 = vsel %vm225, %v1405, 0
    %v1419 = vsel %vm514, %v1414, 0
    %1421 = vmatpush.bf16.msra.mxu0 0
    %1422 = vmatpush.bf16.msra.mxu0 0
    %1423 = vmatpush.bf16.msra.mxu0 0
    %1424 = vmatpush.bf16.msra.mxu0 0
    %1425 = vmatpush.bf16.msra.mxu0 0
    %1426 = vmatpush.bf16.msra.mxu0 0
    %1427 = vmatpush.bf16.msra.mxu0 0
    %1428 = vmatpush.bf16.msra.mxu0 %v1419
    %1429 = vmatmul.bf16.gmra.mxu0 %v1416
    %v1430 = vpop.f32.mrf.mxu0
    %v1431 = vadd.f32 0.0, %v1430
    %v1432 = vpop.f32.mrf.mxu0
    %1433 = vdwg.mxu0
    %1434 = vrot.lane.b32.xlu0 %v1151, 64
    %v1435 = vpop.permute.xlu0 %1434
    %v1437 = vsel %vm225, %v1406, 0
    %v1440 = vsel %vm514, %v1435, 0
    %1442 = vmatpush.bf16.msra.mxu0 0
    %1443 = vmatpush.bf16.msra.mxu0 0
    %1444 = vmatpush.bf16.msra.mxu0 0
    %1445 = vmatpush.bf16.msra.mxu0 0
    %1446 = vmatpush.bf16.msra.mxu0 0
    %1447 = vmatpush.bf16.msra.mxu0 0
    %1448 = vmatpush.bf16.msra.mxu0 0
    %1449 = vmatpush.bf16.msra.mxu0 %v1440
    %1450 = vmatmul.bf16.gmra.mxu0 %v1437
    %v1451 = vpop.f32.mrf.mxu0
    %v1452 = vadd.f32 0.0, %v1451
    %v1453 = vpop.f32.mrf.mxu0
    %1454 = vdwg.mxu0
    %1455 = vrot.lane.b32.xlu0 %v1175, 64
    %v1456 = vpop.permute.xlu0 %1455
    %v1458 = vsel %vm225, %v1407, 0
    %v1461 = vsel %vm514, %v1456, 0
    %1463 = vmatpush.bf16.msra.mxu0 0
    %1464 = vmatpush.bf16.msra.mxu0 0
    %1465 = vmatpush.bf16.msra.mxu0 0
    %1466 = vmatpush.bf16.msra.mxu0 0
    %1467 = vmatpush.bf16.msra.mxu0 0
    %1468 = vmatpush.bf16.msra.mxu0 0
    %1469 = vmatpush.bf16.msra.mxu0 0
    %1470 = vmatpush.bf16.msra.mxu0 %v1461
    %1471 = vmatmul.bf16.gmra.mxu0 %v1458
    %v1472 = vpop.f32.mrf.mxu0
    %v1473 = vadd.f32 0.0, %v1472
    %v1474 = vpop.f32.mrf.mxu0
    %1475 = vdwg.mxu0
    %1476 = vrot.lane.b32.xlu0 %v1199, 64
    %v1477 = vpop.permute.xlu0 %1476
    %v1479 = vsel %vm225, %v1408, 0
    %v1482 = vsel %vm514, %v1477, 0
    %1484 = vmatpush.bf16.msra.mxu0 0
    %1485 = vmatpush.bf16.msra.mxu0 0
    %1486 = vmatpush.bf16.msra.mxu0 0
    %1487 = vmatpush.bf16.msra.mxu0 0
    %1488 = vmatpush.bf16.msra.mxu0 0
    %1489 = vmatpush.bf16.msra.mxu0 0
    %1490 = vmatpush.bf16.msra.mxu0 0
    %1491 = vmatpush.bf16.msra.mxu0 %v1482
    %1492 = vmatmul.bf16.gmra.mxu0 %v1479
    %v1493 = vpop.f32.mrf.mxu0
    %v1494 = vadd.f32 0.0, %v1493
    %v1495 = vpop.f32.mrf.mxu0
    %1496 = vdwg.mxu0
    %1497 = vrot.lane.b32.xlu0 %v1223, 64
    %v1498 = vpop.permute.xlu0 %1497
    %v1500 = vsel %vm225, %v1409, 0
    %v1503 = vsel %vm514, %v1498, 0
    %1505 = vmatpush.bf16.msra.mxu0 0
    %1506 = vmatpush.bf16.msra.mxu0 0
    %1507 = vmatpush.bf16.msra.mxu0 0
    %1508 = vmatpush.bf16.msra.mxu0 0
    %1509 = vmatpush.bf16.msra.mxu0 0
    %1510 = vmatpush.bf16.msra.mxu0 0
    %1511 = vmatpush.bf16.msra.mxu0 0
    %1512 = vmatpush.bf16.msra.mxu0 %v1503
    %1513 = vmatmul.bf16.gmra.mxu0 %v1500
    %v1514 = vpop.f32.mrf.mxu0
    %v1515 = vadd.f32 0.0, %v1514
    %v1516 = vpop.f32.mrf.mxu0
    %1517 = vdwg.mxu0
    %1518 = vrot.lane.b32.xlu0 %v1247, 64
    %v1519 = vpop.permute.xlu0 %1518
    %v1521 = vsel %vm225, %v1410, 0
    %v1524 = vsel %vm514, %v1519, 0
    %1526 = vmatpush.bf16.msra.mxu0 0
    %1527 = vmatpush.bf16.msra.mxu0 0
    %1528 = vmatpush.bf16.msra.mxu0 0
    %1529 = vmatpush.bf16.msra.mxu0 0
    %1530 = vmatpush.bf16.msra.mxu0 0
    %1531 = vmatpush.bf16.msra.mxu0 0
    %1532 = vmatpush.bf16.msra.mxu0 0
    %1533 = vmatpush.bf16.msra.mxu0 %v1524
    %1534 = vmatmul.bf16.gmra.mxu0 %v1521
    %v1535 = vpop.f32.mrf.mxu0
    %v1536 = vadd.f32 0.0, %v1535
    %v1537 = vpop.f32.mrf.mxu0
    %1538 = vdwg.mxu0
    %1539 = vrot.lane.b32.xlu0 %v1271, 64
    %v1540 = vpop.permute.xlu0 %1539
    %v1542 = vsel %vm225, %v1411, 0
    %v1545 = vsel %vm514, %v1540, 0
    %1547 = vmatpush.bf16.msra.mxu0 0
    %1548 = vmatpush.bf16.msra.mxu0 0
    %1549 = vmatpush.bf16.msra.mxu0 0
    %1550 = vmatpush.bf16.msra.mxu0 0
    %1551 = vmatpush.bf16.msra.mxu0 0
    %1552 = vmatpush.bf16.msra.mxu0 0
    %1553 = vmatpush.bf16.msra.mxu0 0
    %1554 = vmatpush.bf16.msra.mxu0 %v1545
    %1555 = vmatmul.bf16.gmra.mxu0 %v1542
    %v1556 = vpop.f32.mrf.mxu0
    %v1557 = vadd.f32 0.0, %v1556
    %v1558 = vpop.f32.mrf.mxu0
    %1559 = vdwg.mxu0
    %1560 = vrot.lane.b32.xlu0 %v1295, 64
    %v1561 = vpop.permute.xlu0 %1560
    %v1563 = vsel %vm225, %v1412, 0
    %v1566 = vsel %vm514, %v1561, 0
    %1568 = vmatpush.bf16.msra.mxu0 0
    %1569 = vmatpush.bf16.msra.mxu0 0
    %1570 = vmatpush.bf16.msra.mxu0 0
    %1571 = vmatpush.bf16.msra.mxu0 0
    %1572 = vmatpush.bf16.msra.mxu0 0
    %1573 = vmatpush.bf16.msra.mxu0 0
    %1574 = vmatpush.bf16.msra.mxu0 0
    %1575 = vmatpush.bf16.msra.mxu0 %v1566
    %1576 = vmatmul.bf16.gmra.mxu0 %v1563
    %v1577 = vpop.f32.mrf.mxu0
    %v1578 = vadd.f32 0.0, %v1577
    %v1579 = vpop.f32.mrf.mxu0
    %1580 = vdwg.mxu0
    %s1581 = scalar_lea.vmem %s6, 16
    %v1582 = vld [vmem:[%s1581] sm:$0xf]
    %v1583 = vld [vmem:[%s1581 + $0x4] sm:$0xf]
    %v1584 = vld [vmem:[%s1581 + $0x8] sm:$0xf]
    %v1585 = vld [vmem:[%s1581 + $0xc] sm:$0xf]
    %v1586 = vpack.c.bf16 %v1431, %v1431
    %v1587 = vpack.c.bf16 %v1452, %v1452
    %v1588 = vpack.c.bf16 %v1473, %v1473
    %v1589 = vpack.c.bf16 %v1494, %v1494
    %v1590 = vpack.c.bf16 %v1515, %v1515
    %v1591 = vpack.c.bf16 %v1536, %v1536
    %v1592 = vpack.c.bf16 %v1557, %v1557
    %v1593 = vpack.c.bf16 %v1578, %v1578
    %v1595 = vsel %vm225, %v1586, 0
    %v1598 = vsel %vm514, %v1582, 0
    %1600 = vmatpush.bf16.msra.mxu0 0
    %1601 = vmatpush.bf16.msra.mxu0 0
    %1602 = vmatpush.bf16.msra.mxu0 0
    %1603 = vmatpush.bf16.msra.mxu0 0
    %1604 = vmatpush.bf16.msra.mxu0 0
    %1605 = vmatpush.bf16.msra.mxu0 0
    %1606 = vmatpush.bf16.msra.mxu0 0
    %1607 = vmatpush.bf16.msra.mxu0 %v1598
    %1608 = vmatmul.bf16.gmra.mxu0 %v1595
    %v1609 = vpop.f32.mrf.mxu0
    %v1610 = vadd.f32 0.0, %v1609
    %v1611 = vpop.f32.mrf.mxu0
    %1612 = vdwg.mxu0
    %v1614 = vsel %vm225, %v1587, 0
    %1616 = vmatpush.bf16.msra.mxu0 0
    %1617 = vmatpush.bf16.msra.mxu0 0
    %1618 = vmatpush.bf16.msra.mxu0 0
    %1619 = vmatpush.bf16.msra.mxu0 0
    %1620 = vmatpush.bf16.msra.mxu0 0
    %1621 = vmatpush.bf16.msra.mxu0 0
    %1622 = vmatpush.bf16.msra.mxu0 0
    %1623 = vmatpush.bf16.msra.mxu0 %v1598
    %1624 = vmatmul.bf16.gmra.mxu0 %v1614
    %v1625 = vpop.f32.mrf.mxu0
    %v1626 = vadd.f32 0.0, %v1625
    %v1627 = vpop.f32.mrf.mxu0
    %1628 = vdwg.mxu0
    %v1630 = vsel %vm225, %v1588, 0
    %v1633 = vsel %vm514, %v1583, 0
    %1635 = vmatpush.bf16.msra.mxu0 0
    %1636 = vmatpush.bf16.msra.mxu0 0
    %1637 = vmatpush.bf16.msra.mxu0 0
    %1638 = vmatpush.bf16.msra.mxu0 0
    %1639 = vmatpush.bf16.msra.mxu0 0
    %1640 = vmatpush.bf16.msra.mxu0 0
    %1641 = vmatpush.bf16.msra.mxu0 0
    %1642 = vmatpush.bf16.msra.mxu0 %v1633
    %1643 = vmatmul.bf16.gmra.mxu0 %v1630
    %v1644 = vpop.f32.mrf.mxu0
    %v1645 = vadd.f32 0.0, %v1644
    %v1646 = vpop.f32.mrf.mxu0
    %1647 = vdwg.mxu0
    %v1649 = vsel %vm225, %v1589, 0
    %1651 = vmatpush.bf16.msra.mxu0 0
    %1652 = vmatpush.bf16.msra.mxu0 0
    %1653 = vmatpush.bf16.msra.mxu0 0
    %1654 = vmatpush.bf16.msra.mxu0 0
    %1655 = vmatpush.bf16.msra.mxu0 0
    %1656 = vmatpush.bf16.msra.mxu0 0
    %1657 = vmatpush.bf16.msra.mxu0 0
    %1658 = vmatpush.bf16.msra.mxu0 %v1633
    %1659 = vmatmul.bf16.gmra.mxu0 %v1649
    %v1660 = vpop.f32.mrf.mxu0
    %v1661 = vadd.f32 0.0, %v1660
    %v1662 = vpop.f32.mrf.mxu0
    %1663 = vdwg.mxu0
    %v1665 = vsel %vm225, %v1590, 0
    %v1668 = vsel %vm514, %v1584, 0
    %1670 = vmatpush.bf16.msra.mxu0 0
    %1671 = vmatpush.bf16.msra.mxu0 0
    %1672 = vmatpush.bf16.msra.mxu0 0
    %1673 = vmatpush.bf16.msra.mxu0 0
    %1674 = vmatpush.bf16.msra.mxu0 0
    %1675 = vmatpush.bf16.msra.mxu0 0
    %1676 = vmatpush.bf16.msra.mxu0 0
    %1677 = vmatpush.bf16.msra.mxu0 %v1668
    %1678 = vmatmul.bf16.gmra.mxu0 %v1665
    %v1679 = vpop.f32.mrf.mxu0
    %v1680 = vadd.f32 0.0, %v1679
    %v1681 = vpop.f32.mrf.mxu0
    %1682 = vdwg.mxu0
    %v1684 = vsel %vm225, %v1591, 0
    %1686 = vmatpush.bf16.msra.mxu0 0
    %1687 = vmatpush.bf16.msra.mxu0 0
    %1688 = vmatpush.bf16.msra.mxu0 0
    %1689 = vmatpush.bf16.msra.mxu0 0
    %1690 = vmatpush.bf16.msra.mxu0 0
    %1691 = vmatpush.bf16.msra.mxu0 0
    %1692 = vmatpush.bf16.msra.mxu0 0
    %1693 = vmatpush.bf16.msra.mxu0 %v1668
    %1694 = vmatmul.bf16.gmra.mxu0 %v1684
    %v1695 = vpop.f32.mrf.mxu0
    %v1696 = vadd.f32 0.0, %v1695
    %v1697 = vpop.f32.mrf.mxu0
    %1698 = vdwg.mxu0
    %v1700 = vsel %vm225, %v1592, 0
    %v1703 = vsel %vm514, %v1585, 0
    %1705 = vmatpush.bf16.msra.mxu0 0
    %1706 = vmatpush.bf16.msra.mxu0 0
    %1707 = vmatpush.bf16.msra.mxu0 0
    %1708 = vmatpush.bf16.msra.mxu0 0
    %1709 = vmatpush.bf16.msra.mxu0 0
    %1710 = vmatpush.bf16.msra.mxu0 0
    %1711 = vmatpush.bf16.msra.mxu0 0
    %1712 = vmatpush.bf16.msra.mxu0 %v1703
    %1713 = vmatmul.bf16.gmra.mxu0 %v1700
    %v1714 = vpop.f32.mrf.mxu0
    %v1715 = vadd.f32 0.0, %v1714
    %v1716 = vpop.f32.mrf.mxu0
    %1717 = vdwg.mxu0
    %v1719 = vsel %vm225, %v1593, 0
    %1721 = vmatpush.bf16.msra.mxu0 0
    %1722 = vmatpush.bf16.msra.mxu0 0
    %1723 = vmatpush.bf16.msra.mxu0 0
    %1724 = vmatpush.bf16.msra.mxu0 0
    %1725 = vmatpush.bf16.msra.mxu0 0
    %1726 = vmatpush.bf16.msra.mxu0 0
    %1727 = vmatpush.bf16.msra.mxu0 0
    %1728 = vmatpush.bf16.msra.mxu0 %v1703
    %1729 = vmatmul.bf16.gmra.mxu0 %v1719
    %v1730 = vpop.f32.mrf.mxu0
    %v1731 = vadd.f32 0.0, %v1730
    %v1732 = vpop.f32.mrf.mxu0
    %1733 = vdwg.mxu0
    %v1734 = vsel %vm174, %v1610, 0.0
    %v1735 = vsel %vm174, %v1645, 0.0
    %v1736 = vadd.f32 %v1734, %v1735
    %v1737 = vsel %vm174, %v1680, 0.0
    %v1738 = vadd.f32 %v1736, %v1737
    %v1739 = vsel %vm174, %v1715, 0.0
    %v1740 = vadd.f32 %v1738, %v1739
    %v1741 = vsel %vm174, %v1626, 0.0
    %v1742 = vsel %vm174, %v1661, 0.0
    %v1743 = vadd.f32 %v1741, %v1742
    %v1744 = vsel %vm174, %v1696, 0.0
    %v1745 = vadd.f32 %v1743, %v1744
    %v1746 = vsel %vm174, %v1731, 0.0
    %v1747 = vadd.f32 %v1745, %v1746
    %s1748 = scalar_lea.vmem %s7, 1
    %v1749 = vld [vmem:[%s1748] sm:$0x1]
    %v1751 = vperm.slane %v1749, 0
    %v1753 = vadd.f32 %v1740, %v1751
    %v1754 = vadd.f32 %v1747, %v1751
    %s1755 = scalar_lea.vmem %s12, 4
    %v1756 = vld [vmem:[%s1755] sm:$0xf]
    %v1757 = vadd.f32 %v1055, %v1753
    %v1758 = vadd.f32 %v1056, %v1754
    %v1759 = vsel %vm174, %v1757, 0.0
    %1760 = vadd.xlane.f32.xlu0 %v1759
    %v1761 = vpop.xlane.xlu0 %1760
    %v1762 = vsel %vm174, %v1758, 0.0
    %1763 = vadd.xlane.f32.xlu0 %v1762
    %v1764 = vpop.xlane.xlu0 %1763
    %v1765 = vmul.f32 %v1761, %v865
    %v1766 = vmul.f32 %v1764, %v865
    %v1767 = vsub.f32 %v1757, %v1765
    %v1768 = vsub.f32 %v1758, %v1766
    %v1769 = vmul.f32 %v1767, %v1767
    %v1770 = vmul.f32 %v1768, %v1768
    %v1771 = vsel %vm174, %v1769, 0.0
    %1772 = vadd.xlane.f32.xlu0 %v1771
    %v1773 = vpop.xlane.xlu0 %1772
    %v1774 = vsel %vm174, %v1770, 0.0
    %1775 = vadd.xlane.f32.xlu0 %v1774
    %v1776 = vpop.xlane.xlu0 %1775
    %v1777 = vmul.f32 %v1773, %v865
    %v1778 = vmul.f32 %v1776, %v865
    %v1779 = vadd.f32 %v1777, 1e-05
    %v1780 = vadd.f32 %v1778, 1e-05
    %v1781 = vrsqrt.pop %v1779
    %v1782 = vmul.f32 %v1781, %v1779
    %v1783 = vmul.f32 %v1782, %v1781
    %v1784 = vmul.f32 0.5, %v1783
    %v1785 = vsub.f32 1.5, %v1784
    %v1786 = vmul.f32 %v1781, %v1785
    %vm1787 = vweird.f32 %v1779
    %vm1788 = vweird.f32 %v1781
    %vm1789 = vmor %vm1787, %vm1788
    %v1790 = vsel %vm1789, %v1781, %v1786
    %v1791 = vrsqrt.pop %v1780
    %v1792 = vmul.f32 %v1791, %v1780
    %v1793 = vmul.f32 %v1792, %v1791
    %v1794 = vmul.f32 0.5, %v1793
    %v1795 = vsub.f32 1.5, %v1794
    %v1796 = vmul.f32 %v1791, %v1795
    %vm1797 = vweird.f32 %v1780
    %vm1798 = vweird.f32 %v1791
    %vm1799 = vmor %vm1797, %vm1798
    %v1800 = vsel %vm1799, %v1791, %v1796
    %v1801 = vmul.f32 %v1767, %v1790
    %v1802 = vmul.f32 %v1768, %v1800
    %v1803 = vperm.slane %v1756, 0
    %v1804 = vmul.f32 %v1801, %v1803
    %v1805 = vmul.f32 %v1802, %v1803
    %v1806 = vperm.slane %v1756, 1
    %v1807 = vadd.f32 %v1804, %v1806
    %v1808 = vadd.f32 %v1805, %v1806
    %v1809 = vpack.c.bf16 %v1808, %v1807
    %s1810 = scalar_lea.vmem %s8, 16
    %v1811 = vld [vmem:[%s1810] sm:$0xf]
    %v1812 = vld [vmem:[%s1810 + $0x4] sm:$0xf]
    %v1813 = vld [vmem:[%s1810 + $0x8] sm:$0xf]
    %v1814 = vld [vmem:[%s1810 + $0xc] sm:$0xf]
    %s1815 = scalar_lea.vmem %s9, 1
    %v1816 = vld [vmem:[%s1815] sm:$0x1]
    %v1818 = vperm.slane %v1816, 0
    %v1824 = vunpack.c.l.b16 %v1811
    %v1825 = vunpack.c.l.b16 %v1812
    %v1826 = vunpack.c.l.b16 %v1813
    %v1827 = vunpack.c.l.b16 %v1814
    %v1828 = vpack.c.b16 %v1825, %v1824
    %v1829 = vpack.c.b16 %v1827, %v1826
    %v1833 = vsel %vm174, %v1809, 0
    %1835 = vmatpush.bf16.msra.mxu0 0
    %1836 = vmatpush.bf16.msra.mxu0 0
    %1837 = vmatpush.bf16.msra.mxu0 0
    %1838 = vmatpush.bf16.msra.mxu0 0
    %1839 = vmatpush.bf16.msra.mxu0 0
    %1840 = vmatpush.bf16.msra.mxu0 0
    %1841 = vmatpush.bf16.msra.mxu0 %v1829
    %1842 = vmatpush.bf16.msra.mxu0 %v1828
    %1843 = vmatmul.bf16.gmra.mxu0 %v1833
    %v1844 = vpop.f32.mrf.mxu0
    %v1845 = vadd.f32 %v1818, %v1844
    %v1846 = vpop.f32.mrf.mxu0
    %v1847 = vadd.f32 %v1818, %v1846
    %1848 = vdwg.mxu0
    %v1849 = vmax.f32 %v1845, 0.0
    %v1850 = vmax.f32 %v1847, 0.0
    %v1851 = vpack.c.bf16 %v1850, %v1849
    %s1852 = scalar_lea.vmem %s10, 32
    %v1853 = vld [vmem:[%s1852] sm:$0xf]
    %v1854 = vld [vmem:[%s1852 + $0x4] sm:$0xf]
    %v1855 = vld [vmem:[%s1852 + $0x8] sm:$0xf]
    %v1856 = vld [vmem:[%s1852 + $0xc] sm:$0xf]
    %v1857 = vld [vmem:[%s1852 + $0x10] sm:$0xf]
    %v1858 = vld [vmem:[%s1852 + $0x14] sm:$0xf]
    %v1859 = vld [vmem:[%s1852 + $0x18] sm:$0xf]
    %v1860 = vld [vmem:[%s1852 + $0x1c] sm:$0xf]
    %s1861 = scalar_lea.vmem %s11, 1
    %v1862 = vld [vmem:[%s1861] sm:$0x1]
    %v1864 = vperm.slane %v1862, 0
    %v1874 = vunpack.c.l.b16 %v1853
    %v1875 = vunpack.c.l.b16 %v1854
    %v1876 = vunpack.c.l.b16 %v1855
    %v1877 = vunpack.c.l.b16 %v1856
    %v1878 = vunpack.c.l.b16 %v1857
    %v1879 = vunpack.c.l.b16 %v1858
    %v1880 = vunpack.c.l.b16 %v1859
    %v1881 = vunpack.c.l.b16 %v1860
    %v1882 = vpack.c.b16 %v1875, %v1874
    %v1883 = vpack.c.b16 %v1877, %v1876
    %v1884 = vpack.c.b16 %v1879, %v1878
    %v1885 = vpack.c.b16 %v1881, %v1880
    %v1891 = vsel %vm987, %v1851, 0
    %1893 = vmatpush.bf16.msra.mxu0 0
    %1894 = vmatpush.bf16.msra.mxu0 0
    %1895 = vmatpush.bf16.msra.mxu0 0
    %1896 = vmatpush.bf16.msra.mxu0 0
    %1897 = vmatpush.bf16.msra.mxu0 %v1885
    %1898 = vmatpush.bf16.msra.mxu0 %v1884
    %1899 = vmatpush.bf16.msra.mxu0 %v1883
    %1900 = vmatpush.bf16.msra.mxu0 %v1882
    %1901 = vmatmul.bf16.gmra.mxu0 %v1891
    %v1902 = vpop.f32.mrf.mxu0
    %v1903 = vadd.f32 %v1864, %v1902
    %v1904 = vpop.f32.mrf.mxu0
    %v1905 = vadd.f32 %v1864, %v1904
    %1906 = vdwg.mxu0
    %v1907 = vadd.f32 %v1807, %v1903
    %v1908 = vadd.f32 %v1808, %v1905
    %v1909 = vsel %vm174, %v1907, 0.0
    %1910 = vadd.xlane.f32.xlu0 %v1909
    %v1911 = vpop.xlane.xlu0 %1910
    %v1912 = vsel %vm174, %v1908, 0.0
    %1913 = vadd.xlane.f32.xlu0 %v1912
    %v1914 = vpop.xlane.xlu0 %1913
    %v1915 = vmul.f32 %v1911, %v865
    %v1916 = vmul.f32 %v1914, %v865
    %v1917 = vsub.f32 %v1907, %v1915
    %v1918 = vsub.f32 %v1908, %v1916
    %v1919 = vmul.f32 %v1917, %v1917
    %v1920 = vmul.f32 %v1918, %v1918
    %v1921 = vsel %vm174, %v1919, 0.0
    %1922 = vadd.xlane.f32.xlu0 %v1921
    %v1923 = vpop.xlane.xlu0 %1922
    %v1924 = vsel %vm174, %v1920, 0.0
    %1925 = vadd.xlane.f32.xlu0 %v1924
    %v1926 = vpop.xlane.xlu0 %1925
    %v1927 = vmul.f32 %v1923, %v865
    %v1928 = vmul.f32 %v1926, %v865
    %v1929 = vadd.f32 %v1927, 1e-05
    %v1930 = vadd.f32 %v1928, 1e-05
    %v1931 = vrsqrt.pop %v1929
    %v1932 = vmul.f32 %v1931, %v1929
    %v1933 = vmul.f32 %v1932, %v1931
    %v1934 = vmul.f32 0.5, %v1933
    %v1935 = vsub.f32 1.5, %v1934
    %v1936 = vmul.f32 %v1931, %v1935
    %vm1937 = vweird.f32 %v1929
    %vm1938 = vweird.f32 %v1931
    %vm1939 = vmor %vm1937, %vm1938
    %v1940 = vsel %vm1939, %v1931, %v1936
    %v1941 = vrsqrt.pop %v1930
    %v1942 = vmul.f32 %v1941, %v1930
    %v1943 = vmul.f32 %v1942, %v1941
    %v1944 = vmul.f32 0.5, %v1943
    %v1945 = vsub.f32 1.5, %v1944
    %v1946 = vmul.f32 %v1941, %v1945
    %vm1947 = vweird.f32 %v1930
    %vm1948 = vweird.f32 %v1941
    %vm1949 = vmor %vm1947, %vm1948
    %v1950 = vsel %vm1949, %v1941, %v1946
    %v1951 = vmul.f32 %v1917, %v1940
    %v1952 = vmul.f32 %v1918, %v1950
    %v1953 = vperm.slane %v1756, 2
    %v1954 = vmul.f32 %v1951, %v1953
    %v1955 = vmul.f32 %v1952, %v1953
    %v1956 = vperm.slane %v1756, 3
    %v1957 = vadd.f32 %v1954, %v1956
    %v1958 = vadd.f32 %v1955, %v1956
    %v1959 = vpack.c.bf16 %v1957, %v1957
    %v1960 = vpack.c.bf16 %v1958, %v1958
    %v1961 = vld [vmem:[%s13] sm:$0xf]
    %v1962 = vld [vmem:[%s13 + $0x4] sm:$0xf]
    %v1963 = vld [vmem:[%s13 + $0x8] sm:$0xf]
    %v1964 = vld [vmem:[%s13 + $0xc] sm:$0xf]
    %v1965 = vld [vmem:[%s14] sm:$0x1]
    %v1967 = vperm.slane %v1965, 0
    %v1971 = vunpack.c.l.b16 %v1959
    %v1972 = vunpack.c.l.b16 %v1960
    %v1973 = vrot.slane %v1972, 7
    %vm1974 = vcmask 1041409
    %v1975 = vsel %vm1974, %v1973, %v1971
    %v1976 = vpack.c.b16 %v1975, %v1975
    %v1981 = vunpack.c.l.b16 %v1961
    %v1982 = vunpack.c.l.b16 %v1962
    %v1983 = vunpack.c.l.b16 %v1963
    %v1984 = vunpack.c.l.b16 %v1964
    %v1985 = vpack.c.b16 %v1982, %v1981
    %v1986 = vpack.c.b16 %v1984, %v1983
    %v1990 = vsel %vm174, %v1976, 0
    %1992 = vmatpush.bf16.msra.mxu0 0
    %1993 = vmatpush.bf16.msra.mxu0 0
    %1994 = vmatpush.bf16.msra.mxu0 0
    %1995 = vmatpush.bf16.msra.mxu0 0
    %1996 = vmatpush.bf16.msra.mxu0 0
    %1997 = vmatpush.bf16.msra.mxu0 0
    %1998 = vmatpush.bf16.msra.mxu0 %v1986
    %1999 = vmatpush.bf16.msra.mxu0 %v1985
    %2000 = vmatmul.bf16.gmra.mxu0 %v1990
    %v2001 = vpop.f32.mrf.mxu0
    %v2002 = vadd.f32 %v1967, %v2001
    %v2003 = vpop.f32.mrf.mxu0
    %2004 = vdwg.mxu0
    %v2005 = vtanh.pop %v2002
    %vm2006 = vcmask 254976
    %2007 = vst.msk [vmem:[#allocation8] sm:$0x3] %vm2006, %v2005
    %v2008 = vld [vmem:[%s1] sm:$0x3f]
    %2009 = vset.pattern.permute.xlu0 0
    %2010 = vperm.xlu0 %2009, %v2008
    %v2011 = vpop.permute.xlu0 %2010
    %vm2012 = vcmp.eq.s32.totalorder %v2011, %v86
    %v2013 = vsel %vm2012, 1.0, 0.0
    %vm2014 = vcmask 130048
    %v2016 = vsel %vm2014, %v2013, 0
    %2018 = vmatpush.msra.mxu0 0.0
    %2019 = vmatpush.msra.mxu0 0.0
    %2020 = vmatpush.msra.mxu0 0.0
    %2021 = vmatpush.msra.mxu0 0.0
    %2022 = vmatpush.msra.mxu0 0.0
    %2023 = vmatpush.msra.mxu0 0.0
    %2024 = vmatpush.msra.mxu0 0.0
    %2025 = vmatpush.msra.mxu0 0.0
    %2026 = vmatpush.msra.mxu0 0.0
    %2027 = vmatpush.msra.mxu0 0.0
    %2028 = vmatpush.msra.mxu0 0.0
    %2029 = vmatpush.msra.mxu0 0.0
    %2030 = vmatpush.msra.mxu0 0.0
    %2031 = vmatpush.msra.mxu0 0.0
    %2032 = vmatpush.msra.mxu0 %v1958
    %2033 = vmatpush.msra.mxu0 %v1957
    %2034 = vmatmul.f32.gmra.mxu0 %v2016
    %v2035 = vpop.f32.mrf.mxu0
    %v2036 = vadd.f32 0.0, %v2035
    %2037 = vdwg.mxu0
    %vm2038 = vcmask 259072
    %2039 = vst.msk [vmem:[#allocation7] sm:$0x3f] %vm2038, %v2036
    // Predicated region
    $region70: #{tpu_custom_call.1} parent=1 // pred_check
      _
    $region71: #{tpu_custom_call.1} parent=1 // pred_check_branch
      %2041 = sbr.rel (0) target = $region73
    $region72: #{tpu_custom_call.1} parent=1 // pred_region
      %2043 = vsyncadd [#allocation4], 0
      %s2045 = sshll.u32 [#allocation7], 4
      %s2046 = int_to_ptr.vmem [resolvable:$true] %s2045
      %s2047 = sshll.u32 %s15, 4
      %s2048 = int_to_ptr.hbm [resolvable:$true] %s2047
      %2050 = dma.vmem_to_hbm [thread:$0]  %s2046, 128, %s2048, [#allocation4]
    $region73: #{tpu_custom_call.1} parent=1 // pred_fallthru
      _
    // Predicated region
    $region74: #{tpu_custom_call.1} parent=1 // pred_check
      _
    $region75: #{tpu_custom_call.1} parent=1 // pred_check_branch
      %2052 = sbr.rel (0) target = $region77
    $region76: #{tpu_custom_call.1} parent=1 // pred_region
      %2054 = vsyncadd [#allocation9], 0
      %s2056 = sshll.u32 [#allocation8], 4
      %s2057 = int_to_ptr.vmem [resolvable:$true] %s2056
      %s2058 = sshll.u32 %s16, 4
      %s2059 = int_to_ptr.hbm [resolvable:$true] %s2058
      %2061 = dma.vmem_to_hbm [thread:$0]  %s2057, 32, %s2059, [#allocation9]
    $region77: #{tpu_custom_call.1} parent=1 // pred_fallthru
      _
    // Predicated region
    $region78: #{tpu_custom_call.1} parent=1 // pred_check
      _
    $region79: #{tpu_custom_call.1} parent=1 // pred_check_branch
      %2063 = sbr.rel (0) target = $region81
    $region80: #{tpu_custom_call.1} parent=1 // pred_region
      %2065 = dma.done [#allocation4], 128
    $region81: #{tpu_custom_call.1} parent=1 // pred_fallthru
      _
    // Predicated region
    $region82: #{tpu_custom_call.1} parent=1 // pred_check
      _
    $region83: #{tpu_custom_call.1} parent=1 // pred_check_branch
      %2067 = sbr.rel (0) target = $region85
    $region84: #{tpu_custom_call.1} parent=1 // pred_region
      %2069 = dma.done [#allocation9], 32
    $region85: #{tpu_custom_call.1} parent=1 // pred_fallthru
      _
    %2070 = vsyncpa [#allocation3], 1
    %2071 = vsyncpa [#allocation6], 1
    %2072 = vsyncpa [#allocation4], 1
    %2073 = vsyncpa [#allocation9], 1

</llo_original>
